<compile_context>
chip_gen: v6e
topology: v6e:2x2x1
jax: 0.10.0
libtpu: 0.0.40
codegen_flags: <defaults>
</compile_context>

<pallas_src>
import jax
import jax.numpy as jnp
from jax.experimental import pallas as pl
from jax.experimental.pallas import tpu as pltpu

MM_DTYPE = jnp.bfloat16          # MXU operand dtype (accumulation is always f32)
_GATE_ORDER = (0, 1, 3, 2)       # PyTorch (i, f, g, o) blocks reordered to (i, f, o, g)
                                 # so sigmoid covers lanes [0:6H] and tanh lanes [6H:8H].


# ----------------------------------------------------------------------------
# Fused kernel builder.
# ----------------------------------------------------------------------------
def _make_textrnn_kernel(S, B_pad, D, H, O, num_layers, mm_dtype):
    TH = 2 * H       # fused hidden width  [h_fwd | h_rev]
    G8 = 8 * H       # fused gate width    [i_f i_r f_f f_r o_f o_r g_f g_r]

    def kernel(*refs):
        it = iter(refs)
        x_ref = next(it)                                    # (S*B_pad, 2D) mm_dtype
        layers = [(next(it), next(it), next(it))            # (W_ih_blk, W_hh_blk, b_cat)
                  for _ in range(num_layers)]
        fcwf_ref = next(it)                                 # (H, O) mm_dtype
        fcwr_ref = next(it)                                 # (H, O) mm_dtype
        fcb_ref = next(it)                                  # (1, O) f32
        out_ref = next(it)                                  # (B_pad, O) f32
        gx_scr = next(it)                                   # (S*B_pad, 8H) f32 gate slabs
        nxt_scr = next(it)                                  # (S*B_pad, 4H) f32 next-layer input

        zeros_c = jnp.zeros((B_pad, TH), jnp.float32)

        def fused_cell(gates, c_cat):
            # gates: (B_pad, 8H), columns [i(2H) f(2H) o(2H) g(2H)], each = [fwd|rev].
            sig = jax.nn.sigmoid(gates[:, 0:6 * H])         # i, f, o (both directions)
            g_cat = jnp.tanh(gates[:, 6 * H:8 * H])         # g       (both directions)
            i_cat = sig[:, 0:TH]
            f_cat = sig[:, TH:2 * TH]
            o_cat = sig[:, 2 * TH:3 * TH]
            c_new = f_cat * c_cat + i_cat * g_cat
            h_new = o_cat * jnp.tanh(c_new)
            return h_new, c_new

        # ---- Layer-0 bulk input projection: ONE (S*B_pad, 2D) @ (2D, 8H) matmul.
        wih0_ref, _, b0_ref = layers[0]
        gx_scr[...] = jnp.dot(x_ref[...], wih0_ref[...],
                              preferred_element_type=jnp.float32) + b0_ref[...]

        h_fwd_last = None
        fc_rev = None
        for l in range(num_layers):
            is_last = (l == num_layers - 1)
            _, whh_ref, _ = layers[l]
            whh = whh_ref[...]                              # (2H, 8H), hoisted load

            h_cat, c_cat = zeros_c, zeros_c
            for t in range(S):
                r0 = t * B_pad
                # Serial chain: only the (B_pad,2H)@(2H,8H) recurrent matmul + cell.
                gates = gx_scr[r0:r0 + B_pad, :] + jnp.dot(
                    h_cat.astype(mm_dtype), whh,
                    preferred_element_type=jnp.float32)
                h_cat, c_cat = fused_cell(gates, c_cat)

                if is_last:
                    if t == 0:
                        # Reverse output at position S-1 (zero init, one step) ==
                        # out[:, -1, H:2H]; do its FC half now, off the chain tail.
                        fc_rev = jnp.dot(h_cat[:, H:TH].astype(mm_dtype),
                                         fcwr_ref[...],
                                         preferred_element_type=jnp.float32)
                else:
                    # Arrange this layer's outputs as the next layer's fused input:
                    # row block r of nxt_scr = [ out[r] (2H) | out[S-1-r] (2H) ].
                    q0 = (S - 1 - t) * B_pad
                    h_f = h_cat[:, 0:H]                     # fwd hidden at time t
                    h_r = h_cat[:, H:TH]                    # rev hidden at time S-1-t
                    nxt_scr[r0:r0 + B_pad, 0:H] = h_f
                    nxt_scr[q0:q0 + B_pad, 2 * H:3 * H] = h_f
                    nxt_scr[q0:q0 + B_pad, H:2 * H] = h_r
                    nxt_scr[r0:r0 + B_pad, 3 * H:4 * H] = h_r

            if is_last:
                h_fwd_last = h_cat[:, 0:H]
            else:
                # Bulk fused projection for the next layer: one (S*B_pad,4H)@(4H,8H).
                wih_ref, _, b_ref = layers[l + 1]
                gx_scr[...] = jnp.dot(nxt_scr[...].astype(mm_dtype), wih_ref[...],
                                      preferred_element_type=jnp.float32) + b_ref[...]
                # TODO(synk): nn.LSTM inter-layer dropout is train-mode only; eval semantics here.

        # Final FC on out[:, -1, :] = [h_fwd_last | h_rev_last]; reverse half was
        # already accumulated into fc_rev after step 0 of the last layer.
        out_ref[...] = (jnp.dot(h_fwd_last.astype(mm_dtype), fcwf_ref[...],
                                preferred_element_type=jnp.float32)
                        + fc_rev + fcb_ref[...])

    return kernel


# ----------------------------------------------------------------------------
# One-time weight packing: block-diagonal, direction-fused, gate-reordered, bf16.
# ----------------------------------------------------------------------------
def _pack_blockdiag(wf_t, wr_t, H, dtype):
    """wf_t: (Kf, 4H), wr_t: (Kr, 4H) in PyTorch (i,f,g,o) column order.
    Returns (Kf+Kr, 8H) block-diagonal with columns [i_f i_r f_f f_r o_f o_r g_f g_r]."""
    kf, kr = wf_t.shape[0], wr_t.shape[0]
    cols = []
    for g in _GATE_ORDER:
        cf = wf_t[:, g * H:(g + 1) * H]
        cr = wr_t[:, g * H:(g + 1) * H]
        cols.append(jnp.concatenate([cf, jnp.zeros((kr, H), wf_t.dtype)], axis=0))
        cols.append(jnp.concatenate([jnp.zeros((kf, H), wr_t.dtype), cr], axis=0))
    return jnp.concatenate(cols, axis=1).astype(dtype)


def _pack_bias(bf, br, H):
    """bf, br: (1, 4H) fused biases -> (1, 8H) in the fused column order (stays f32)."""
    blocks = []
    for g in _GATE_ORDER:
        blocks.append(bf[:, g * H:(g + 1) * H])
        blocks.append(br[:, g * H:(g + 1) * H])
    return jnp.concatenate(blocks, axis=1)


def pack_params(params, mm_dtype=MM_DTYPE):
    H = params["lstm"][0][0][1].shape[0]                    # w_hh_t: (H, 4H)
    layers = []
    for layer in params["lstm"]:
        (wih_f, whh_f, b_f), (wih_r, whh_r, b_r) = layer
        layers.append(dict(
            wih=_pack_blockdiag(wih_f, wih_r, H, mm_dtype),  # (2*Din, 8H)
            whh=_pack_blockdiag(whh_f, whh_r, H, mm_dtype),  # (2H, 8H)
            b=_pack_bias(b_f, b_r, H)))                      # (1, 8H) f32
    fcw = params["fc_w_t"]                                   # (2H, O)
    return dict(layers=layers,
                fcw_f=fcw[:H].astype(mm_dtype),              # (H, O)
                fcw_r=fcw[H:].astype(mm_dtype),              # (H, O)
                fc_b=params["fc_b"])                         # (1, O) f32


# ----------------------------------------------------------------------------
# Public forward: one gridless pallas_call for the whole TextRNN forward pass.
# ----------------------------------------------------------------------------
def text_rnn_forward(x, packed):
    """x: (batch, seq, embedding_dim) float32, batch_first like the PyTorch module."""
    B, S, D = x.shape
    num_layers = len(packed["layers"])
    H, O = packed["fcw_f"].shape
    mm_dtype = packed["fcw_f"].dtype
    B_pad = ((B + 7) // 8) * 8                               # full sublane tiles per step

    # Wrapper-side (one-time, XLA) layout plumbing: time-major, pair each timestep
    # with its time-reversed partner ([x[t] | x[S-1-t]]), pad batch to 8 sublanes.
    x_tm = jnp.transpose(x, (1, 0, 2))                       # (S, B, D)
    x_cat = jnp.concatenate([x_tm, x_tm[::-1]], axis=-1)     # (S, B, 2D)
    if B_pad > B:
        x_cat = jnp.pad(x_cat, ((0, 0), (0, B_pad - B), (0, 0)))
    x_blk = x_cat.reshape(S * B_pad, 2 * D).astype(mm_dtype)

    inputs = [x_blk]
    for lyr in packed["layers"]:
        inputs += [lyr["wih"], lyr["whh"], lyr["b"]]
    inputs += [packed["fcw_f"], packed["fcw_r"], packed["fc_b"]]

    vmem = pl.BlockSpec(memory_space=pltpu.MemorySpace.VMEM)
    kernel = _make_textrnn_kernel(S, B_pad, D, H, O, num_layers, mm_dtype)

    out = pl.pallas_call(
        kernel,
        out_shape=jax.ShapeDtypeStruct((B_pad, O), jnp.float32),
        in_specs=[vmem] * len(inputs),
        out_specs=vmem,
        scratch_shapes=[
            pltpu.VMEM((S * B_pad, 8 * H), jnp.float32),     # fused gate slabs (bulk proj)
            pltpu.VMEM((S * B_pad, 4 * H), jnp.float32),     # next-layer fused input
        ],
    )(*inputs)
    return out[:B]


# ----------------------------------------------------------------------------
# Parameter init: same distribution as PyTorch (uniform +-1/sqrt(H)), stored
# pre-transposed / bias-fused per direction (f32, PyTorch i,f,g,o gate order).
# ----------------------------------------------------------------------------
def init_params(key, embedding_dim, hidden_size, output_size, num_layers):
    H = hidden_size
    k_lstm = 1.0 / jnp.sqrt(jnp.float32(H))
    layers = []
    for l in range(num_layers):
        in_dim = embedding_dim if l == 0 else 2 * H
        layer = []
        for _d in range(2):  # forward / reverse directions
            key, k1, k2, k3, k4 = jax.random.split(key, 5)
            w_ih = jax.random.uniform(k1, (4 * H, in_dim), jnp.float32, -k_lstm, k_lstm)
            w_hh = jax.random.uniform(k2, (4 * H, H), jnp.float32, -k_lstm, k_lstm)
            b_ih = jax.random.uniform(k3, (4 * H,), jnp.float32, -k_lstm, k_lstm)
            b_hh = jax.random.uniform(k4, (4 * H,), jnp.float32, -k_lstm, k_lstm)
            layer.append((jnp.transpose(w_ih),               # (D_in, 4H)
                          jnp.transpose(w_hh),               # (H, 4H)
                          (b_ih + b_hh).reshape(1, -1)))     # (1, 4H) fused bias
        layers.append(layer)
    key, kw, kb = jax.random.split(key, 3)
    k_fc = 1.0 / jnp.sqrt(jnp.float32(2 * H))
    fc_w = jax.random.uniform(kw, (output_size, 2 * H), jnp.float32, -k_fc, k_fc)
    fc_b = jax.random.uniform(kb, (output_size,), jnp.float32, -k_fc, k_fc)
    return {"lstm": layers,
            "fc_w_t": jnp.transpose(fc_w),                   # (2H, O)
            "fc_b": fc_b.reshape(1, -1)}                     # (1, O)


# ----------------------------------------------------------------------------
# Pure-JAX reference (scan-based bidirectional LSTM).  mm_dtype lets us mirror
# the kernel's bf16 MXU operands exactly (tight check) or run full f32 (sanity).
# ----------------------------------------------------------------------------
def _ref_forward(x, params, mm_dtype=jnp.float32):
    def mm(a, b):
        return jnp.dot(a.astype(mm_dtype), b.astype(mm_dtype),
                       preferred_element_type=jnp.float32,
                       precision=jax.lax.Precision.HIGHEST)

    def lstm_dir(seq, w_ih_t, w_hh_t, b, reverse):
        H = w_hh_t.shape[0]
        xs = jnp.flip(seq, 0) if reverse else seq
        Bb = seq.shape[1]

        def step(carry, x_t):
            h, c = carry
            gates = mm(x_t, w_ih_t) + mm(h, w_hh_t) + b
            i = jax.nn.sigmoid(gates[:, :H])
            f = jax.nn.sigmoid(gates[:, H:2 * H])
            g = jnp.tanh(gates[:, 2 * H:3 * H])
            o = jax.nn.sigmoid(gates[:, 3 * H:])
            c = f * c + i * g
            h = o * jnp.tanh(c)
            return (h, c), h

        init = (jnp.zeros((Bb, H), jnp.float32), jnp.zeros((Bb, H), jnp.float32))
        _, hs = jax.lax.scan(step, init, xs)
        return jnp.flip(hs, 0) if reverse else hs

    layer_in = jnp.transpose(x, (1, 0, 2))                   # (S, B, D)
    for layer in params["lstm"]:
        outs = [lstm_dir(layer_in, *layer[0], reverse=False),
                lstm_dir(layer_in, *layer[1], reverse=True)]
        layer_in = jnp.concatenate(outs, axis=-1)
    last = layer_in[-1]                                      # (B, 2H)
    return mm(last, params["fc_w_t"]) + params["fc_b"]


if __name__ == "__main__":
    parameter = {
        "embedding_dim": 16,
        "hidden_size": 32,
        "output_size": 4,
        "num_layers": 2,
        "dropout": 0.5,   # not applied (eval-mode semantics)
    }
    batch, seq = 2, 8

    key = jax.random.PRNGKey(0)
    key, kx = jax.random.split(key)
    x = jax.random.normal(kx, (batch, seq, parameter["embedding_dim"]), jnp.float32)

    params = init_params(key,
                         parameter["embedding_dim"],
                         parameter["hidden_size"],
                         parameter["output_size"],
                         parameter["num_layers"])
    packed = pack_params(params)

    out = jax.block_until_ready(text_rnn_forward(x, packed))
    assert out.shape == (batch, parameter["output_size"])

    # Tight check: reference using the same bf16 MXU-operand numerics as the kernel.
    ref_mm = _ref_forward(x, params, mm_dtype=MM_DTYPE)
    assert jnp.allclose(out, ref_mm, atol=5e-3, rtol=5e-3), (out, ref_mm)

    # Sanity check against the true f32 reference (bf16 rounding compounds over
    # 8 steps x 2 layers, so a looser tolerance is expected here).
    ref_f32 = _ref_forward(x, params, mm_dtype=jnp.float32)
    assert jnp.allclose(out, ref_f32, atol=5e-2, rtol=5e-2), (out, ref_f32)

    print("KERNEL_OK")
</pallas_src>

<mosaic_0001>
module attributes {stable_mosaic.version = 11 : i64} {
  func.func @kernel(%arg0: memref<64x32xbf16, #tpu.memory_space<vmem>>, %arg1: memref<32x256xbf16, #tpu.memory_space<vmem>>, %arg2: memref<64x256xbf16, #tpu.memory_space<vmem>>, %arg3: memref<1x256xf32, #tpu.memory_space<vmem>>, %arg4: memref<128x256xbf16, #tpu.memory_space<vmem>>, %arg5: memref<64x256xbf16, #tpu.memory_space<vmem>>, %arg6: memref<1x256xf32, #tpu.memory_space<vmem>>, %arg7: memref<32x4xbf16, #tpu.memory_space<vmem>>, %arg8: memref<32x4xbf16, #tpu.memory_space<vmem>>, %arg9: memref<1x4xf32, #tpu.memory_space<vmem>>, %arg10: memref<8x4xf32, #tpu.memory_space<vmem>>, %arg11: memref<64x256xf32, #tpu.memory_space<vmem>>, %arg12: memref<64x128xf32, #tpu.memory_space<vmem>>) attributes {dimension_semantics = [], scalar_prefetch = 0 : i64, scratch_operands = 2 : i64, tpu.core_type = #tpu.core_type<tc>} {
    %cst = arith.constant 0.000000e+00 : f32
    %0 = vector.broadcast %cst : f32 to vector<8x64xf32>
    %c0 = arith.constant 0 : index
    %c0_0 = arith.constant 0 : index
    %1 = vector.load %arg0[%c0, %c0_0] : memref<64x32xbf16, #tpu.memory_space<vmem>>, vector<64x32xbf16>
    %c0_1 = arith.constant 0 : index
    %c0_2 = arith.constant 0 : index
    %2 = vector.load %arg1[%c0_1, %c0_2] : memref<32x256xbf16, #tpu.memory_space<vmem>>, vector<32x256xbf16>
    %cst_3 = arith.constant dense<0.000000e+00> : vector<64x256xf32>
    %3 = tpu.matmul %1, %2, %cst_3 {dimension_numbers = #tpu.dot_dimension_numbers<[1], [0], [0], [1], [0, 0, 1, 1], [], []>} : vector<64x32xbf16>, vector<32x256xbf16>, vector<64x256xf32> -> vector<64x256xf32>
    %c0_4 = arith.constant 0 : index
    %c0_5 = arith.constant 0 : index
    %4 = vector.load %arg3[%c0_4, %c0_5] : memref<1x256xf32, #tpu.memory_space<vmem>>, vector<1x256xf32>
    %5 = vector.broadcast %4 : vector<1x256xf32> to vector<64x256xf32>
    %6 = arith.addf %3, %5 : vector<64x256xf32>
    %c0_6 = arith.constant 0 : index
    %c0_7 = arith.constant 0 : index
    %7 = vector.load %arg11[%c0_6, %c0_7] : memref<64x256xf32, #tpu.memory_space<vmem>>, vector<64x256xf32>
    tpu.vector_store %arg11[%c0_6, %c0_7], %6 {strides = array<i32>} : memref<64x256xf32, #tpu.memory_space<vmem>>, vector<64x256xf32>,
    %c0_8 = arith.constant 0 : index
    %c0_9 = arith.constant 0 : index
    %8 = vector.load %arg2[%c0_8, %c0_9] : memref<64x256xbf16, #tpu.memory_space<vmem>>, vector<64x256xbf16>
    %c0_10 = arith.constant 0 : index
    %c0_11 = arith.constant 0 : index
    %9 = vector.load %arg11[%c0_10, %c0_11] : memref<64x256xf32, #tpu.memory_space<vmem>>, vector<8x256xf32>
    %10 = arith.truncf %0 : vector<8x64xf32> to vector<8x64xbf16>
    %cst_12 = arith.constant dense<0.000000e+00> : vector<8x256xf32>
    %11 = tpu.matmul %10, %8, %cst_12 {dimension_numbers = #tpu.dot_dimension_numbers<[1], [0], [0], [1], [0, 0, 1, 1], [], []>} : vector<8x64xbf16>, vector<64x256xbf16>, vector<8x256xf32> -> vector<8x256xf32>
    %12 = arith.addf %9, %11 : vector<8x256xf32>
    %13 = vector.extract_strided_slice %12 {offsets = [0, 0], sizes = [8, 192], strides = [1, 1]} : vector<8x256xf32> to vector<8x192xf32>
    %14 = arith.negf %13 : vector<8x192xf32>
    %15 = math.exp %14 : vector<8x192xf32>
    %cst_13 = arith.constant 1.000000e+00 : f32
    %16 = vector.broadcast %cst_13 : f32 to vector<8x192xf32>
    %17 = arith.addf %16, %15 : vector<8x192xf32>
    %18 = arith.divf %16, %17 : vector<8x192xf32>
    %19 = vector.extract_strided_slice %12 {offsets = [0, 192], sizes = [8, 64], strides = [1, 1]} : vector<8x256xf32> to vector<8x64xf32>
    %20 = math.tanh %19 : vector<8x64xf32>
    %21 = vector.extract_strided_slice %18 {offsets = [0, 0], sizes = [8, 64], strides = [1, 1]} : vector<8x192xf32> to vector<8x64xf32>
    %22 = vector.extract_strided_slice %18 {offsets = [0, 64], sizes = [8, 64], strides = [1, 1]} : vector<8x192xf32> to vector<8x64xf32>
    %23 = vector.extract_strided_slice %18 {offsets = [0, 128], sizes = [8, 64], strides = [1, 1]} : vector<8x192xf32> to vector<8x64xf32>
    %24 = arith.mulf %22, %0 : vector<8x64xf32>
    %25 = arith.mulf %21, %20 : vector<8x64xf32>
    %26 = arith.addf %24, %25 : vector<8x64xf32>
    %27 = math.tanh %26 : vector<8x64xf32>
    %28 = arith.mulf %23, %27 : vector<8x64xf32>
    %29 = vector.extract_strided_slice %28 {offsets = [0, 0], sizes = [8, 32], strides = [1, 1]} : vector<8x64xf32> to vector<8x32xf32>
    %30 = vector.extract_strided_slice %28 {offsets = [0, 32], sizes = [8, 32], strides = [1, 1]} : vector<8x64xf32> to vector<8x32xf32>
    %c0_14 = arith.constant 0 : index
    %c0_15 = arith.constant 0 : index
    %31 = vector.load %arg12[%c0_14, %c0_15] : memref<64x128xf32, #tpu.memory_space<vmem>>, vector<8x32xf32>
    tpu.vector_store %arg12[%c0_14, %c0_15], %29 {strides = array<i32>} : memref<64x128xf32, #tpu.memory_space<vmem>>, vector<8x32xf32>,
    %c56 = arith.constant 56 : index
    %c64 = arith.constant 64 : index
    %32 = vector.load %arg12[%c56, %c64] : memref<64x128xf32, #tpu.memory_space<vmem>>, vector<8x32xf32>
    tpu.vector_store %arg12[%c56, %c64], %29 {strides = array<i32>} : memref<64x128xf32, #tpu.memory_space<vmem>>, vector<8x32xf32>,
    %c56_16 = arith.constant 56 : index
    %c32 = arith.constant 32 : index
    %33 = vector.load %arg12[%c56_16, %c32] : memref<64x128xf32, #tpu.memory_space<vmem>>, vector<8x32xf32>
    tpu.vector_store %arg12[%c56_16, %c32], %30 {strides = array<i32>} : memref<64x128xf32, #tpu.memory_space<vmem>>, vector<8x32xf32>,
    %c0_17 = arith.constant 0 : index
    %c96 = arith.constant 96 : index
    %34 = vector.load %arg12[%c0_17, %c96] : memref<64x128xf32, #tpu.memory_space<vmem>>, vector<8x32xf32>
    tpu.vector_store %arg12[%c0_17, %c96], %30 {strides = array<i32>} : memref<64x128xf32, #tpu.memory_space<vmem>>, vector<8x32xf32>,
    %c8 = arith.constant 8 : index
    %c0_18 = arith.constant 0 : index
    %35 = vector.load %arg11[%c8, %c0_18] : memref<64x256xf32, #tpu.memory_space<vmem>>, vector<8x256xf32>
    %36 = arith.truncf %28 : vector<8x64xf32> to vector<8x64xbf16>
    %cst_19 = arith.constant dense<0.000000e+00> : vector<8x256xf32>
    %37 = tpu.matmul %36, %8, %cst_19 {dimension_numbers = #tpu.dot_dimension_numbers<[1], [0], [0], [1], [0, 0, 1, 1], [], []>} : vector<8x64xbf16>, vector<64x256xbf16>, vector<8x256xf32> -> vector<8x256xf32>
    %38 = arith.addf %35, %37 : vector<8x256xf32>
    %39 = vector.extract_strided_slice %38 {offsets = [0, 0], sizes = [8, 192], strides = [1, 1]} : vector<8x256xf32> to vector<8x192xf32>
    %40 = arith.negf %39 : vector<8x192xf32>
    %41 = math.exp %40 : vector<8x192xf32>
    %cst_20 = arith.constant 1.000000e+00 : f32
    %42 = vector.broadcast %cst_20 : f32 to vector<8x192xf32>
    %43 = arith.addf %42, %41 : vector<8x192xf32>
    %44 = arith.divf %42, %43 : vector<8x192xf32>
    %45 = vector.extract_strided_slice %38 {offsets = [0, 192], sizes = [8, 64], strides = [1, 1]} : vector<8x256xf32> to vector<8x64xf32>
    %46 = math.tanh %45 : vector<8x64xf32>
    %47 = vector.extract_strided_slice %44 {offsets = [0, 0], sizes = [8, 64], strides = [1, 1]} : vector<8x192xf32> to vector<8x64xf32>
    %48 = vector.extract_strided_slice %44 {offsets = [0, 64], sizes = [8, 64], strides = [1, 1]} : vector<8x192xf32> to vector<8x64xf32>
    %49 = vector.extract_strided_slice %44 {offsets = [0, 128], sizes = [8, 64], strides = [1, 1]} : vector<8x192xf32> to vector<8x64xf32>
    %50 = arith.mulf %48, %26 : vector<8x64xf32>
    %51 = arith.mulf %47, %46 : vector<8x64xf32>
    %52 = arith.addf %50, %51 : vector<8x64xf32>
    %53 = math.tanh %52 : vector<8x64xf32>
    %54 = arith.mulf %49, %53 : vector<8x64xf32>
    %55 = vector.extract_strided_slice %54 {offsets = [0, 0], sizes = [8, 32], strides = [1, 1]} : vector<8x64xf32> to vector<8x32xf32>
    %56 = vector.extract_strided_slice %54 {offsets = [0, 32], sizes = [8, 32], strides = [1, 1]} : vector<8x64xf32> to vector<8x32xf32>
    %c8_21 = arith.constant 8 : index
    %c0_22 = arith.constant 0 : index
    %57 = vector.load %arg12[%c8_21, %c0_22] : memref<64x128xf32, #tpu.memory_space<vmem>>, vector<8x32xf32>
    tpu.vector_store %arg12[%c8_21, %c0_22], %55 {strides = array<i32>} : memref<64x128xf32, #tpu.memory_space<vmem>>, vector<8x32xf32>,
    %c48 = arith.constant 48 : index
    %c64_23 = arith.constant 64 : index
    %58 = vector.load %arg12[%c48, %c64_23] : memref<64x128xf32, #tpu.memory_space<vmem>>, vector<8x32xf32>
    tpu.vector_store %arg12[%c48, %c64_23], %55 {strides = array<i32>} : memref<64x128xf32, #tpu.memory_space<vmem>>, vector<8x32xf32>,
    %c48_24 = arith.constant 48 : index
    %c32_25 = arith.constant 32 : index
    %59 = vector.load %arg12[%c48_24, %c32_25] : memref<64x128xf32, #tpu.memory_space<vmem>>, vector<8x32xf32>
    tpu.vector_store %arg12[%c48_24, %c32_25], %56 {strides = array<i32>} : memref<64x128xf32, #tpu.memory_space<vmem>>, vector<8x32xf32>,
    %c8_26 = arith.constant 8 : index
    %c96_27 = arith.constant 96 : index
    %60 = vector.load %arg12[%c8_26, %c96_27] : memref<64x128xf32, #tpu.memory_space<vmem>>, vector<8x32xf32>
    tpu.vector_store %arg12[%c8_26, %c96_27], %56 {strides = array<i32>} : memref<64x128xf32, #tpu.memory_space<vmem>>, vector<8x32xf32>,
    %c16 = arith.constant 16 : index
    %c0_28 = arith.constant 0 : index
    %61 = vector.load %arg11[%c16, %c0_28] : memref<64x256xf32, #tpu.memory_space<vmem>>, vector<8x256xf32>
    %62 = arith.truncf %54 : vector<8x64xf32> to vector<8x64xbf16>
    %cst_29 = arith.constant dense<0.000000e+00> : vector<8x256xf32>
    %63 = tpu.matmul %62, %8, %cst_29 {dimension_numbers = #tpu.dot_dimension_numbers<[1], [0], [0], [1], [0, 0, 1, 1], [], []>} : vector<8x64xbf16>, vector<64x256xbf16>, vector<8x256xf32> -> vector<8x256xf32>
    %64 = arith.addf %61, %63 : vector<8x256xf32>
    %65 = vector.extract_strided_slice %64 {offsets = [0, 0], sizes = [8, 192], strides = [1, 1]} : vector<8x256xf32> to vector<8x192xf32>
    %66 = arith.negf %65 : vector<8x192xf32>
    %67 = math.exp %66 : vector<8x192xf32>
    %cst_30 = arith.constant 1.000000e+00 : f32
    %68 = vector.broadcast %cst_30 : f32 to vector<8x192xf32>
    %69 = arith.addf %68, %67 : vector<8x192xf32>
    %70 = arith.divf %68, %69 : vector<8x192xf32>
    %71 = vector.extract_strided_slice %64 {offsets = [0, 192], sizes = [8, 64], strides = [1, 1]} : vector<8x256xf32> to vector<8x64xf32>
    %72 = math.tanh %71 : vector<8x64xf32>
    %73 = vector.extract_strided_slice %70 {offsets = [0, 0], sizes = [8, 64], strides = [1, 1]} : vector<8x192xf32> to vector<8x64xf32>
    %74 = vector.extract_strided_slice %70 {offsets = [0, 64], sizes = [8, 64], strides = [1, 1]} : vector<8x192xf32> to vector<8x64xf32>
    %75 = vector.extract_strided_slice %70 {offsets = [0, 128], sizes = [8, 64], strides = [1, 1]} : vector<8x192xf32> to vector<8x64xf32>
    %76 = arith.mulf %74, %52 : vector<8x64xf32>
    %77 = arith.mulf %73, %72 : vector<8x64xf32>
    %78 = arith.addf %76, %77 : vector<8x64xf32>
    %79 = math.tanh %78 : vector<8x64xf32>
    %80 = arith.mulf %75, %79 : vector<8x64xf32>
    %81 = vector.extract_strided_slice %80 {offsets = [0, 0], sizes = [8, 32], strides = [1, 1]} : vector<8x64xf32> to vector<8x32xf32>
    %82 = vector.extract_strided_slice %80 {offsets = [0, 32], sizes = [8, 32], strides = [1, 1]} : vector<8x64xf32> to vector<8x32xf32>
    %c16_31 = arith.constant 16 : index
    %c0_32 = arith.constant 0 : index
    %83 = vector.load %arg12[%c16_31, %c0_32] : memref<64x128xf32, #tpu.memory_space<vmem>>, vector<8x32xf32>
    tpu.vector_store %arg12[%c16_31, %c0_32], %81 {strides = array<i32>} : memref<64x128xf32, #tpu.memory_space<vmem>>, vector<8x32xf32>,
    %c40 = arith.constant 40 : index
    %c64_33 = arith.constant 64 : index
    %84 = vector.load %arg12[%c40, %c64_33] : memref<64x128xf32, #tpu.memory_space<vmem>>, vector<8x32xf32>
    tpu.vector_store %arg12[%c40, %c64_33], %81 {strides = array<i32>} : memref<64x128xf32, #tpu.memory_space<vmem>>, vector<8x32xf32>,
    %c40_34 = arith.constant 40 : index
    %c32_35 = arith.constant 32 : index
    %85 = vector.load %arg12[%c40_34, %c32_35] : memref<64x128xf32, #tpu.memory_space<vmem>>, vector<8x32xf32>
    tpu.vector_store %arg12[%c40_34, %c32_35], %82 {strides = array<i32>} : memref<64x128xf32, #tpu.memory_space<vmem>>, vector<8x32xf32>,
    %c16_36 = arith.constant 16 : index
    %c96_37 = arith.constant 96 : index
    %86 = vector.load %arg12[%c16_36, %c96_37] : memref<64x128xf32, #tpu.memory_space<vmem>>, vector<8x32xf32>
    tpu.vector_store %arg12[%c16_36, %c96_37], %82 {strides = array<i32>} : memref<64x128xf32, #tpu.memory_space<vmem>>, vector<8x32xf32>,
    %c24 = arith.constant 24 : index
    %c0_38 = arith.constant 0 : index
    %87 = vector.load %arg11[%c24, %c0_38] : memref<64x256xf32, #tpu.memory_space<vmem>>, vector<8x256xf32>
    %88 = arith.truncf %80 : vector<8x64xf32> to vector<8x64xbf16>
    %cst_39 = arith.constant dense<0.000000e+00> : vector<8x256xf32>
    %89 = tpu.matmul %88, %8, %cst_39 {dimension_numbers = #tpu.dot_dimension_numbers<[1], [0], [0], [1], [0, 0, 1, 1], [], []>} : vector<8x64xbf16>, vector<64x256xbf16>, vector<8x256xf32> -> vector<8x256xf32>
    %90 = arith.addf %87, %89 : vector<8x256xf32>
    %91 = vector.extract_strided_slice %90 {offsets = [0, 0], sizes = [8, 192], strides = [1, 1]} : vector<8x256xf32> to vector<8x192xf32>
    %92 = arith.negf %91 : vector<8x192xf32>
    %93 = math.exp %92 : vector<8x192xf32>
    %cst_40 = arith.constant 1.000000e+00 : f32
    %94 = vector.broadcast %cst_40 : f32 to vector<8x192xf32>
    %95 = arith.addf %94, %93 : vector<8x192xf32>
    %96 = arith.divf %94, %95 : vector<8x192xf32>
    %97 = vector.extract_strided_slice %90 {offsets = [0, 192], sizes = [8, 64], strides = [1, 1]} : vector<8x256xf32> to vector<8x64xf32>
    %98 = math.tanh %97 : vector<8x64xf32>
    %99 = vector.extract_strided_slice %96 {offsets = [0, 0], sizes = [8, 64], strides = [1, 1]} : vector<8x192xf32> to vector<8x64xf32>
    %100 = vector.extract_strided_slice %96 {offsets = [0, 64], sizes = [8, 64], strides = [1, 1]} : vector<8x192xf32> to vector<8x64xf32>
    %101 = vector.extract_strided_slice %96 {offsets = [0, 128], sizes = [8, 64], strides = [1, 1]} : vector<8x192xf32> to vector<8x64xf32>
    %102 = arith.mulf %100, %78 : vector<8x64xf32>
    %103 = arith.mulf %99, %98 : vector<8x64xf32>
    %104 = arith.addf %102, %103 : vector<8x64xf32>
    %105 = math.tanh %104 : vector<8x64xf32>
    %106 = arith.mulf %101, %105 : vector<8x64xf32>
    %107 = vector.extract_strided_slice %106 {offsets = [0, 0], sizes = [8, 32], strides = [1, 1]} : vector<8x64xf32> to vector<8x32xf32>
    %108 = vector.extract_strided_slice %106 {offsets = [0, 32], sizes = [8, 32], strides = [1, 1]} : vector<8x64xf32> to vector<8x32xf32>
    %c24_41 = arith.constant 24 : index
    %c0_42 = arith.constant 0 : index
    %109 = vector.load %arg12[%c24_41, %c0_42] : memref<64x128xf32, #tpu.memory_space<vmem>>, vector<8x32xf32>
    tpu.vector_store %arg12[%c24_41, %c0_42], %107 {strides = array<i32>} : memref<64x128xf32, #tpu.memory_space<vmem>>, vector<8x32xf32>,
    %c32_43 = arith.constant 32 : index
    %c64_44 = arith.constant 64 : index
    %110 = vector.load %arg12[%c32_43, %c64_44] : memref<64x128xf32, #tpu.memory_space<vmem>>, vector<8x32xf32>
    tpu.vector_store %arg12[%c32_43, %c64_44], %107 {strides = array<i32>} : memref<64x128xf32, #tpu.memory_space<vmem>>, vector<8x32xf32>,
    %c32_45 = arith.constant 32 : index
    %c32_46 = arith.constant 32 : index
    %111 = vector.load %arg12[%c32_45, %c32_46] : memref<64x128xf32, #tpu.memory_space<vmem>>, vector<8x32xf32>
    tpu.vector_store %arg12[%c32_45, %c32_46], %108 {strides = array<i32>} : memref<64x128xf32, #tpu.memory_space<vmem>>, vector<8x32xf32>,
    %c24_47 = arith.constant 24 : index
    %c96_48 = arith.constant 96 : index
    %112 = vector.load %arg12[%c24_47, %c96_48] : memref<64x128xf32, #tpu.memory_space<vmem>>, vector<8x32xf32>
    tpu.vector_store %arg12[%c24_47, %c96_48], %108 {strides = array<i32>} : memref<64x128xf32, #tpu.memory_space<vmem>>, vector<8x32xf32>,
    %c32_49 = arith.constant 32 : index
    %c0_50 = arith.constant 0 : index
    %113 = vector.load %arg11[%c32_49, %c0_50] : memref<64x256xf32, #tpu.memory_space<vmem>>, vector<8x256xf32>
    %114 = arith.truncf %106 : vector<8x64xf32> to vector<8x64xbf16>
    %cst_51 = arith.constant dense<0.000000e+00> : vector<8x256xf32>
    %115 = tpu.matmul %114, %8, %cst_51 {dimension_numbers = #tpu.dot_dimension_numbers<[1], [0], [0], [1], [0, 0, 1, 1], [], []>} : vector<8x64xbf16>, vector<64x256xbf16>, vector<8x256xf32> -> vector<8x256xf32>
    %116 = arith.addf %113, %115 : vector<8x256xf32>
    %117 = vector.extract_strided_slice %116 {offsets = [0, 0], sizes = [8, 192], strides = [1, 1]} : vector<8x256xf32> to vector<8x192xf32>
    %118 = arith.negf %117 : vector<8x192xf32>
    %119 = math.exp %118 : vector<8x192xf32>
    %cst_52 = arith.constant 1.000000e+00 : f32
    %120 = vector.broadcast %cst_52 : f32 to vector<8x192xf32>
    %121 = arith.addf %120, %119 : vector<8x192xf32>
    %122 = arith.divf %120, %121 : vector<8x192xf32>
    %123 = vector.extract_strided_slice %116 {offsets = [0, 192], sizes = [8, 64], strides = [1, 1]} : vector<8x256xf32> to vector<8x64xf32>
    %124 = math.tanh %123 : vector<8x64xf32>
    %125 = vector.extract_strided_slice %122 {offsets = [0, 0], sizes = [8, 64], strides = [1, 1]} : vector<8x192xf32> to vector<8x64xf32>
    %126 = vector.extract_strided_slice %122 {offsets = [0, 64], sizes = [8, 64], strides = [1, 1]} : vector<8x192xf32> to vector<8x64xf32>
    %127 = vector.extract_strided_slice %122 {offsets = [0, 128], sizes = [8, 64], strides = [1, 1]} : vector<8x192xf32> to vector<8x64xf32>
    %128 = arith.mulf %126, %104 : vector<8x64xf32>
    %129 = arith.mulf %125, %124 : vector<8x64xf32>
    %130 = arith.addf %128, %129 : vector<8x64xf32>
    %131 = math.tanh %130 : vector<8x64xf32>
    %132 = arith.mulf %127, %131 : vector<8x64xf32>
    %133 = vector.extract_strided_slice %132 {offsets = [0, 0], sizes = [8, 32], strides = [1, 1]} : vector<8x64xf32> to vector<8x32xf32>
    %134 = vector.extract_strided_slice %132 {offsets = [0, 32], sizes = [8, 32], strides = [1, 1]} : vector<8x64xf32> to vector<8x32xf32>
    %c32_53 = arith.constant 32 : index
    %c0_54 = arith.constant 0 : index
    %135 = vector.load %arg12[%c32_53, %c0_54] : memref<64x128xf32, #tpu.memory_space<vmem>>, vector<8x32xf32>
    tpu.vector_store %arg12[%c32_53, %c0_54], %133 {strides = array<i32>} : memref<64x128xf32, #tpu.memory_space<vmem>>, vector<8x32xf32>,
    %c24_55 = arith.constant 24 : index
    %c64_56 = arith.constant 64 : index
    %136 = vector.load %arg12[%c24_55, %c64_56] : memref<64x128xf32, #tpu.memory_space<vmem>>, vector<8x32xf32>
    tpu.vector_store %arg12[%c24_55, %c64_56], %133 {strides = array<i32>} : memref<64x128xf32, #tpu.memory_space<vmem>>, vector<8x32xf32>,
    %c24_57 = arith.constant 24 : index
    %c32_58 = arith.constant 32 : index
    %137 = vector.load %arg12[%c24_57, %c32_58] : memref<64x128xf32, #tpu.memory_space<vmem>>, vector<8x32xf32>
    tpu.vector_store %arg12[%c24_57, %c32_58], %134 {strides = array<i32>} : memref<64x128xf32, #tpu.memory_space<vmem>>, vector<8x32xf32>,
    %c32_59 = arith.constant 32 : index
    %c96_60 = arith.constant 96 : index
    %138 = vector.load %arg12[%c32_59, %c96_60] : memref<64x128xf32, #tpu.memory_space<vmem>>, vector<8x32xf32>
    tpu.vector_store %arg12[%c32_59, %c96_60], %134 {strides = array<i32>} : memref<64x128xf32, #tpu.memory_space<vmem>>, vector<8x32xf32>,
    %c40_61 = arith.constant 40 : index
    %c0_62 = arith.constant 0 : index
    %139 = vector.load %arg11[%c40_61, %c0_62] : memref<64x256xf32, #tpu.memory_space<vmem>>, vector<8x256xf32>
    %140 = arith.truncf %132 : vector<8x64xf32> to vector<8x64xbf16>
    %cst_63 = arith.constant dense<0.000000e+00> : vector<8x256xf32>
    %141 = tpu.matmul %140, %8, %cst_63 {dimension_numbers = #tpu.dot_dimension_numbers<[1], [0], [0], [1], [0, 0, 1, 1], [], []>} : vector<8x64xbf16>, vector<64x256xbf16>, vector<8x256xf32> -> vector<8x256xf32>
    %142 = arith.addf %139, %141 : vector<8x256xf32>
    %143 = vector.extract_strided_slice %142 {offsets = [0, 0], sizes = [8, 192], strides = [1, 1]} : vector<8x256xf32> to vector<8x192xf32>
    %144 = arith.negf %143 : vector<8x192xf32>
    %145 = math.exp %144 : vector<8x192xf32>
    %cst_64 = arith.constant 1.000000e+00 : f32
    %146 = vector.broadcast %cst_64 : f32 to vector<8x192xf32>
    %147 = arith.addf %146, %145 : vector<8x192xf32>
    %148 = arith.divf %146, %147 : vector<8x192xf32>
    %149 = vector.extract_strided_slice %142 {offsets = [0, 192], sizes = [8, 64], strides = [1, 1]} : vector<8x256xf32> to vector<8x64xf32>
    %150 = math.tanh %149 : vector<8x64xf32>
    %151 = vector.extract_strided_slice %148 {offsets = [0, 0], sizes = [8, 64], strides = [1, 1]} : vector<8x192xf32> to vector<8x64xf32>
    %152 = vector.extract_strided_slice %148 {offsets = [0, 64], sizes = [8, 64], strides = [1, 1]} : vector<8x192xf32> to vector<8x64xf32>
    %153 = vector.extract_strided_slice %148 {offsets = [0, 128], sizes = [8, 64], strides = [1, 1]} : vector<8x192xf32> to vector<8x64xf32>
    %154 = arith.mulf %152, %130 : vector<8x64xf32>
    %155 = arith.mulf %151, %150 : vector<8x64xf32>
    %156 = arith.addf %154, %155 : vector<8x64xf32>
    %157 = math.tanh %156 : vector<8x64xf32>
    %158 = arith.mulf %153, %157 : vector<8x64xf32>
    %159 = vector.extract_strided_slice %158 {offsets = [0, 0], sizes = [8, 32], strides = [1, 1]} : vector<8x64xf32> to vector<8x32xf32>
    %160 = vector.extract_strided_slice %158 {offsets = [0, 32], sizes = [8, 32], strides = [1, 1]} : vector<8x64xf32> to vector<8x32xf32>
    %c40_65 = arith.constant 40 : index
    %c0_66 = arith.constant 0 : index
    %161 = vector.load %arg12[%c40_65, %c0_66] : memref<64x128xf32, #tpu.memory_space<vmem>>, vector<8x32xf32>
    tpu.vector_store %arg12[%c40_65, %c0_66], %159 {strides = array<i32>} : memref<64x128xf32, #tpu.memory_space<vmem>>, vector<8x32xf32>,
    %c16_67 = arith.constant 16 : index
    %c64_68 = arith.constant 64 : index
    %162 = vector.load %arg12[%c16_67, %c64_68] : memref<64x128xf32, #tpu.memory_space<vmem>>, vector<8x32xf32>
    tpu.vector_store %arg12[%c16_67, %c64_68], %159 {strides = array<i32>} : memref<64x128xf32, #tpu.memory_space<vmem>>, vector<8x32xf32>,
    %c16_69 = arith.constant 16 : index
    %c32_70 = arith.constant 32 : index
    %163 = vector.load %arg12[%c16_69, %c32_70] : memref<64x128xf32, #tpu.memory_space<vmem>>, vector<8x32xf32>
    tpu.vector_store %arg12[%c16_69, %c32_70], %160 {strides = array<i32>} : memref<64x128xf32, #tpu.memory_space<vmem>>, vector<8x32xf32>,
    %c40_71 = arith.constant 40 : index
    %c96_72 = arith.constant 96 : index
    %164 = vector.load %arg12[%c40_71, %c96_72] : memref<64x128xf32, #tpu.memory_space<vmem>>, vector<8x32xf32>
    tpu.vector_store %arg12[%c40_71, %c96_72], %160 {strides = array<i32>} : memref<64x128xf32, #tpu.memory_space<vmem>>, vector<8x32xf32>,
    %c48_73 = arith.constant 48 : index
    %c0_74 = arith.constant 0 : index
    %165 = vector.load %arg11[%c48_73, %c0_74] : memref<64x256xf32, #tpu.memory_space<vmem>>, vector<8x256xf32>
    %166 = arith.truncf %158 : vector<8x64xf32> to vector<8x64xbf16>
    %cst_75 = arith.constant dense<0.000000e+00> : vector<8x256xf32>
    %167 = tpu.matmul %166, %8, %cst_75 {dimension_numbers = #tpu.dot_dimension_numbers<[1], [0], [0], [1], [0, 0, 1, 1], [], []>} : vector<8x64xbf16>, vector<64x256xbf16>, vector<8x256xf32> -> vector<8x256xf32>
    %168 = arith.addf %165, %167 : vector<8x256xf32>
    %169 = vector.extract_strided_slice %168 {offsets = [0, 0], sizes = [8, 192], strides = [1, 1]} : vector<8x256xf32> to vector<8x192xf32>
    %170 = arith.negf %169 : vector<8x192xf32>
    %171 = math.exp %170 : vector<8x192xf32>
    %cst_76 = arith.constant 1.000000e+00 : f32
    %172 = vector.broadcast %cst_76 : f32 to vector<8x192xf32>
    %173 = arith.addf %172, %171 : vector<8x192xf32>
    %174 = arith.divf %172, %173 : vector<8x192xf32>
    %175 = vector.extract_strided_slice %168 {offsets = [0, 192], sizes = [8, 64], strides = [1, 1]} : vector<8x256xf32> to vector<8x64xf32>
    %176 = math.tanh %175 : vector<8x64xf32>
    %177 = vector.extract_strided_slice %174 {offsets = [0, 0], sizes = [8, 64], strides = [1, 1]} : vector<8x192xf32> to vector<8x64xf32>
    %178 = vector.extract_strided_slice %174 {offsets = [0, 64], sizes = [8, 64], strides = [1, 1]} : vector<8x192xf32> to vector<8x64xf32>
    %179 = vector.extract_strided_slice %174 {offsets = [0, 128], sizes = [8, 64], strides = [1, 1]} : vector<8x192xf32> to vector<8x64xf32>
    %180 = arith.mulf %178, %156 : vector<8x64xf32>
    %181 = arith.mulf %177, %176 : vector<8x64xf32>
    %182 = arith.addf %180, %181 : vector<8x64xf32>
    %183 = math.tanh %182 : vector<8x64xf32>
    %184 = arith.mulf %179, %183 : vector<8x64xf32>
    %185 = vector.extract_strided_slice %184 {offsets = [0, 0], sizes = [8, 32], strides = [1, 1]} : vector<8x64xf32> to vector<8x32xf32>
    %186 = vector.extract_strided_slice %184 {offsets = [0, 32], sizes = [8, 32], strides = [1, 1]} : vector<8x64xf32> to vector<8x32xf32>
    %c48_77 = arith.constant 48 : index
    %c0_78 = arith.constant 0 : index
    %187 = vector.load %arg12[%c48_77, %c0_78] : memref<64x128xf32, #tpu.memory_space<vmem>>, vector<8x32xf32>
    tpu.vector_store %arg12[%c48_77, %c0_78], %185 {strides = array<i32>} : memref<64x128xf32, #tpu.memory_space<vmem>>, vector<8x32xf32>,
    %c8_79 = arith.constant 8 : index
    %c64_80 = arith.constant 64 : index
    %188 = vector.load %arg12[%c8_79, %c64_80] : memref<64x128xf32, #tpu.memory_space<vmem>>, vector<8x32xf32>
    tpu.vector_store %arg12[%c8_79, %c64_80], %185 {strides = array<i32>} : memref<64x128xf32, #tpu.memory_space<vmem>>, vector<8x32xf32>,
    %c8_81 = arith.constant 8 : index
    %c32_82 = arith.constant 32 : index
    %189 = vector.load %arg12[%c8_81, %c32_82] : memref<64x128xf32, #tpu.memory_space<vmem>>, vector<8x32xf32>
    tpu.vector_store %arg12[%c8_81, %c32_82], %186 {strides = array<i32>} : memref<64x128xf32, #tpu.memory_space<vmem>>, vector<8x32xf32>,
    %c48_83 = arith.constant 48 : index
    %c96_84 = arith.constant 96 : index
    %190 = vector.load %arg12[%c48_83, %c96_84] : memref<64x128xf32, #tpu.memory_space<vmem>>, vector<8x32xf32>
    tpu.vector_store %arg12[%c48_83, %c96_84], %186 {strides = array<i32>} : memref<64x128xf32, #tpu.memory_space<vmem>>, vector<8x32xf32>,
    %c56_85 = arith.constant 56 : index
    %c0_86 = arith.constant 0 : index
    %191 = vector.load %arg11[%c56_85, %c0_86] : memref<64x256xf32, #tpu.memory_space<vmem>>, vector<8x256xf32>
    %192 = arith.truncf %184 : vector<8x64xf32> to vector<8x64xbf16>
    %cst_87 = arith.constant dense<0.000000e+00> : vector<8x256xf32>
    %193 = tpu.matmul %192, %8, %cst_87 {dimension_numbers = #tpu.dot_dimension_numbers<[1], [0], [0], [1], [0, 0, 1, 1], [], []>} : vector<8x64xbf16>, vector<64x256xbf16>, vector<8x256xf32> -> vector<8x256xf32>
    %194 = arith.addf %191, %193 : vector<8x256xf32>
    %195 = vector.extract_strided_slice %194 {offsets = [0, 0], sizes = [8, 192], strides = [1, 1]} : vector<8x256xf32> to vector<8x192xf32>
    %196 = arith.negf %195 : vector<8x192xf32>
    %197 = math.exp %196 : vector<8x192xf32>
    %cst_88 = arith.constant 1.000000e+00 : f32
    %198 = vector.broadcast %cst_88 : f32 to vector<8x192xf32>
    %199 = arith.addf %198, %197 : vector<8x192xf32>
    %200 = arith.divf %198, %199 : vector<8x192xf32>
    %201 = vector.extract_strided_slice %194 {offsets = [0, 192], sizes = [8, 64], strides = [1, 1]} : vector<8x256xf32> to vector<8x64xf32>
    %202 = math.tanh %201 : vector<8x64xf32>
    %203 = vector.extract_strided_slice %200 {offsets = [0, 0], sizes = [8, 64], strides = [1, 1]} : vector<8x192xf32> to vector<8x64xf32>
    %204 = vector.extract_strided_slice %200 {offsets = [0, 64], sizes = [8, 64], strides = [1, 1]} : vector<8x192xf32> to vector<8x64xf32>
    %205 = vector.extract_strided_slice %200 {offsets = [0, 128], sizes = [8, 64], strides = [1, 1]} : vector<8x192xf32> to vector<8x64xf32>
    %206 = arith.mulf %204, %182 : vector<8x64xf32>
    %207 = arith.mulf %203, %202 : vector<8x64xf32>
    %208 = arith.addf %206, %207 : vector<8x64xf32>
    %209 = math.tanh %208 : vector<8x64xf32>
    %210 = arith.mulf %205, %209 : vector<8x64xf32>
    %211 = vector.extract_strided_slice %210 {offsets = [0, 0], sizes = [8, 32], strides = [1, 1]} : vector<8x64xf32> to vector<8x32xf32>
    %212 = vector.extract_strided_slice %210 {offsets = [0, 32], sizes = [8, 32], strides = [1, 1]} : vector<8x64xf32> to vector<8x32xf32>
    %c56_89 = arith.constant 56 : index
    %c0_90 = arith.constant 0 : index
    %213 = vector.load %arg12[%c56_89, %c0_90] : memref<64x128xf32, #tpu.memory_space<vmem>>, vector<8x32xf32>
    tpu.vector_store %arg12[%c56_89, %c0_90], %211 {strides = array<i32>} : memref<64x128xf32, #tpu.memory_space<vmem>>, vector<8x32xf32>,
    %c0_91 = arith.constant 0 : index
    %c64_92 = arith.constant 64 : index
    %214 = vector.load %arg12[%c0_91, %c64_92] : memref<64x128xf32, #tpu.memory_space<vmem>>, vector<8x32xf32>
    tpu.vector_store %arg12[%c0_91, %c64_92], %211 {strides = array<i32>} : memref<64x128xf32, #tpu.memory_space<vmem>>, vector<8x32xf32>,
    %c0_93 = arith.constant 0 : index
    %c32_94 = arith.constant 32 : index
    %215 = vector.load %arg12[%c0_93, %c32_94] : memref<64x128xf32, #tpu.memory_space<vmem>>, vector<8x32xf32>
    tpu.vector_store %arg12[%c0_93, %c32_94], %212 {strides = array<i32>} : memref<64x128xf32, #tpu.memory_space<vmem>>, vector<8x32xf32>,
    %c56_95 = arith.constant 56 : index
    %c96_96 = arith.constant 96 : index
    %216 = vector.load %arg12[%c56_95, %c96_96] : memref<64x128xf32, #tpu.memory_space<vmem>>, vector<8x32xf32>
    tpu.vector_store %arg12[%c56_95, %c96_96], %212 {strides = array<i32>} : memref<64x128xf32, #tpu.memory_space<vmem>>, vector<8x32xf32>,
    %c0_97 = arith.constant 0 : index
    %c0_98 = arith.constant 0 : index
    %217 = vector.load %arg12[%c0_97, %c0_98] : memref<64x128xf32, #tpu.memory_space<vmem>>, vector<64x128xf32>
    %218 = arith.truncf %217 : vector<64x128xf32> to vector<64x128xbf16>
    %c0_99 = arith.constant 0 : index
    %c0_100 = arith.constant 0 : index
    %219 = vector.load %arg4[%c0_99, %c0_100] : memref<128x256xbf16, #tpu.memory_space<vmem>>, vector<128x256xbf16>
    %cst_101 = arith.constant dense<0.000000e+00> : vector<64x256xf32>
    %220 = tpu.matmul %218, %219, %cst_101 {dimension_numbers = #tpu.dot_dimension_numbers<[1], [0], [0], [1], [0, 0, 1, 1], [], []>} : vector<64x128xbf16>, vector<128x256xbf16>, vector<64x256xf32> -> vector<64x256xf32>
    %c0_102 = arith.constant 0 : index
    %c0_103 = arith.constant 0 : index
    %221 = vector.load %arg6[%c0_102, %c0_103] : memref<1x256xf32, #tpu.memory_space<vmem>>, vector<1x256xf32>
    %222 = vector.broadcast %221 : vector<1x256xf32> to vector<64x256xf32>
    %223 = arith.addf %220, %222 : vector<64x256xf32>
    %c0_104 = arith.constant 0 : index
    %c0_105 = arith.constant 0 : index
    %224 = vector.load %arg11[%c0_104, %c0_105] : memref<64x256xf32, #tpu.memory_space<vmem>>, vector<64x256xf32>
    tpu.vector_store %arg11[%c0_104, %c0_105], %223 {strides = array<i32>} : memref<64x256xf32, #tpu.memory_space<vmem>>, vector<64x256xf32>,
    %c0_106 = arith.constant 0 : index
    %c0_107 = arith.constant 0 : index
    %225 = vector.load %arg5[%c0_106, %c0_107] : memref<64x256xbf16, #tpu.memory_space<vmem>>, vector<64x256xbf16>
    %c0_108 = arith.constant 0 : index
    %c0_109 = arith.constant 0 : index
    %226 = vector.load %arg11[%c0_108, %c0_109] : memref<64x256xf32, #tpu.memory_space<vmem>>, vector<8x256xf32>
    %227 = arith.truncf %0 : vector<8x64xf32> to vector<8x64xbf16>
    %cst_110 = arith.constant dense<0.000000e+00> : vector<8x256xf32>
    %228 = tpu.matmul %227, %225, %cst_110 {dimension_numbers = #tpu.dot_dimension_numbers<[1], [0], [0], [1], [0, 0, 1, 1], [], []>} : vector<8x64xbf16>, vector<64x256xbf16>, vector<8x256xf32> -> vector<8x256xf32>
    %229 = arith.addf %226, %228 : vector<8x256xf32>
    %230 = vector.extract_strided_slice %229 {offsets = [0, 0], sizes = [8, 192], strides = [1, 1]} : vector<8x256xf32> to vector<8x192xf32>
    %231 = arith.negf %230 : vector<8x192xf32>
    %232 = math.exp %231 : vector<8x192xf32>
    %cst_111 = arith.constant 1.000000e+00 : f32
    %233 = vector.broadcast %cst_111 : f32 to vector<8x192xf32>
    %234 = arith.addf %233, %232 : vector<8x192xf32>
    %235 = arith.divf %233, %234 : vector<8x192xf32>
    %236 = vector.extract_strided_slice %229 {offsets = [0, 192], sizes = [8, 64], strides = [1, 1]} : vector<8x256xf32> to vector<8x64xf32>
    %237 = math.tanh %236 : vector<8x64xf32>
    %238 = vector.extract_strided_slice %235 {offsets = [0, 0], sizes = [8, 64], strides = [1, 1]} : vector<8x192xf32> to vector<8x64xf32>
    %239 = vector.extract_strided_slice %235 {offsets = [0, 64], sizes = [8, 64], strides = [1, 1]} : vector<8x192xf32> to vector<8x64xf32>
    %240 = vector.extract_strided_slice %235 {offsets = [0, 128], sizes = [8, 64], strides = [1, 1]} : vector<8x192xf32> to vector<8x64xf32>
    %241 = arith.mulf %239, %0 : vector<8x64xf32>
    %242 = arith.mulf %238, %237 : vector<8x64xf32>
    %243 = arith.addf %241, %242 : vector<8x64xf32>
    %244 = math.tanh %243 : vector<8x64xf32>
    %245 = arith.mulf %240, %244 : vector<8x64xf32>
    %246 = vector.extract_strided_slice %245 {offsets = [0, 32], sizes = [8, 32], strides = [1, 1]} : vector<8x64xf32> to vector<8x32xf32>
    %247 = arith.truncf %246 : vector<8x32xf32> to vector<8x32xbf16>
    %c0_112 = arith.constant 0 : index
    %c0_113 = arith.constant 0 : index
    %248 = vector.load %arg8[%c0_112, %c0_113] : memref<32x4xbf16, #tpu.memory_space<vmem>>, vector<32x4xbf16>
    %cst_114 = arith.constant dense<0.000000e+00> : vector<8x4xf32>
    %249 = tpu.matmul %247, %248, %cst_114 {dimension_numbers = #tpu.dot_dimension_numbers<[1], [0], [0], [1], [0, 0, 1, 1], [], []>} : vector<8x32xbf16>, vector<32x4xbf16>, vector<8x4xf32> -> vector<8x4xf32>
    %c8_115 = arith.constant 8 : index
    %c0_116 = arith.constant 0 : index
    %250 = vector.load %arg11[%c8_115, %c0_116] : memref<64x256xf32, #tpu.memory_space<vmem>>, vector<8x256xf32>
    %251 = arith.truncf %245 : vector<8x64xf32> to vector<8x64xbf16>
    %cst_117 = arith.constant dense<0.000000e+00> : vector<8x256xf32>
    %252 = tpu.matmul %251, %225, %cst_117 {dimension_numbers = #tpu.dot_dimension_numbers<[1], [0], [0], [1], [0, 0, 1, 1], [], []>} : vector<8x64xbf16>, vector<64x256xbf16>, vector<8x256xf32> -> vector<8x256xf32>
    %253 = arith.addf %250, %252 : vector<8x256xf32>
    %254 = vector.extract_strided_slice %253 {offsets = [0, 0], sizes = [8, 192], strides = [1, 1]} : vector<8x256xf32> to vector<8x192xf32>
    %255 = arith.negf %254 : vector<8x192xf32>
    %256 = math.exp %255 : vector<8x192xf32>
    %cst_118 = arith.constant 1.000000e+00 : f32
    %257 = vector.broadcast %cst_118 : f32 to vector<8x192xf32>
    %258 = arith.addf %257, %256 : vector<8x192xf32>
    %259 = arith.divf %257, %258 : vector<8x192xf32>
    %260 = vector.extract_strided_slice %253 {offsets = [0, 192], sizes = [8, 64], strides = [1, 1]} : vector<8x256xf32> to vector<8x64xf32>
    %261 = math.tanh %260 : vector<8x64xf32>
    %262 = vector.extract_strided_slice %259 {offsets = [0, 0], sizes = [8, 64], strides = [1, 1]} : vector<8x192xf32> to vector<8x64xf32>
    %263 = vector.extract_strided_slice %259 {offsets = [0, 64], sizes = [8, 64], strides = [1, 1]} : vector<8x192xf32> to vector<8x64xf32>
    %264 = vector.extract_strided_slice %259 {offsets = [0, 128], sizes = [8, 64], strides = [1, 1]} : vector<8x192xf32> to vector<8x64xf32>
    %265 = arith.mulf %263, %243 : vector<8x64xf32>
    %266 = arith.mulf %262, %261 : vector<8x64xf32>
    %267 = arith.addf %265, %266 : vector<8x64xf32>
    %268 = math.tanh %267 : vector<8x64xf32>
    %269 = arith.mulf %264, %268 : vector<8x64xf32>
    %c16_119 = arith.constant 16 : index
    %c0_120 = arith.constant 0 : index
    %270 = vector.load %arg11[%c16_119, %c0_120] : memref<64x256xf32, #tpu.memory_space<vmem>>, vector<8x256xf32>
    %271 = arith.truncf %269 : vector<8x64xf32> to vector<8x64xbf16>
    %cst_121 = arith.constant dense<0.000000e+00> : vector<8x256xf32>
    %272 = tpu.matmul %271, %225, %cst_121 {dimension_numbers = #tpu.dot_dimension_numbers<[1], [0], [0], [1], [0, 0, 1, 1], [], []>} : vector<8x64xbf16>, vector<64x256xbf16>, vector<8x256xf32> -> vector<8x256xf32>
    %273 = arith.addf %270, %272 : vector<8x256xf32>
    %274 = vector.extract_strided_slice %273 {offsets = [0, 0], sizes = [8, 192], strides = [1, 1]} : vector<8x256xf32> to vector<8x192xf32>
    %275 = arith.negf %274 : vector<8x192xf32>
    %276 = math.exp %275 : vector<8x192xf32>
    %cst_122 = arith.constant 1.000000e+00 : f32
    %277 = vector.broadcast %cst_122 : f32 to vector<8x192xf32>
    %278 = arith.addf %277, %276 : vector<8x192xf32>
    %279 = arith.divf %277, %278 : vector<8x192xf32>
    %280 = vector.extract_strided_slice %273 {offsets = [0, 192], sizes = [8, 64], strides = [1, 1]} : vector<8x256xf32> to vector<8x64xf32>
    %281 = math.tanh %280 : vector<8x64xf32>
    %282 = vector.extract_strided_slice %279 {offsets = [0, 0], sizes = [8, 64], strides = [1, 1]} : vector<8x192xf32> to vector<8x64xf32>
    %283 = vector.extract_strided_slice %279 {offsets = [0, 64], sizes = [8, 64], strides = [1, 1]} : vector<8x192xf32> to vector<8x64xf32>
    %284 = vector.extract_strided_slice %279 {offsets = [0, 128], sizes = [8, 64], strides = [1, 1]} : vector<8x192xf32> to vector<8x64xf32>
    %285 = arith.mulf %283, %267 : vector<8x64xf32>
    %286 = arith.mulf %282, %281 : vector<8x64xf32>
    %287 = arith.addf %285, %286 : vector<8x64xf32>
    %288 = math.tanh %287 : vector<8x64xf32>
    %289 = arith.mulf %284, %288 : vector<8x64xf32>
    %c24_123 = arith.constant 24 : index
    %c0_124 = arith.constant 0 : index
    %290 = vector.load %arg11[%c24_123, %c0_124] : memref<64x256xf32, #tpu.memory_space<vmem>>, vector<8x256xf32>
    %291 = arith.truncf %289 : vector<8x64xf32> to vector<8x64xbf16>
    %cst_125 = arith.constant dense<0.000000e+00> : vector<8x256xf32>
    %292 = tpu.matmul %291, %225, %cst_125 {dimension_numbers = #tpu.dot_dimension_numbers<[1], [0], [0], [1], [0, 0, 1, 1], [], []>} : vector<8x64xbf16>, vector<64x256xbf16>, vector<8x256xf32> -> vector<8x256xf32>
    %293 = arith.addf %290, %292 : vector<8x256xf32>
    %294 = vector.extract_strided_slice %293 {offsets = [0, 0], sizes = [8, 192], strides = [1, 1]} : vector<8x256xf32> to vector<8x192xf32>
    %295 = arith.negf %294 : vector<8x192xf32>
    %296 = math.exp %295 : vector<8x192xf32>
    %cst_126 = arith.constant 1.000000e+00 : f32
    %297 = vector.broadcast %cst_126 : f32 to vector<8x192xf32>
    %298 = arith.addf %297, %296 : vector<8x192xf32>
    %299 = arith.divf %297, %298 : vector<8x192xf32>
    %300 = vector.extract_strided_slice %293 {offsets = [0, 192], sizes = [8, 64], strides = [1, 1]} : vector<8x256xf32> to vector<8x64xf32>
    %301 = math.tanh %300 : vector<8x64xf32>
    %302 = vector.extract_strided_slice %299 {offsets = [0, 0], sizes = [8, 64], strides = [1, 1]} : vector<8x192xf32> to vector<8x64xf32>
    %303 = vector.extract_strided_slice %299 {offsets = [0, 64], sizes = [8, 64], strides = [1, 1]} : vector<8x192xf32> to vector<8x64xf32>
    %304 = vector.extract_strided_slice %299 {offsets = [0, 128], sizes = [8, 64], strides = [1, 1]} : vector<8x192xf32> to vector<8x64xf32>
    %305 = arith.mulf %303, %287 : vector<8x64xf32>
    %306 = arith.mulf %302, %301 : vector<8x64xf32>
    %307 = arith.addf %305, %306 : vector<8x64xf32>
    %308 = math.tanh %307 : vector<8x64xf32>
    %309 = arith.mulf %304, %308 : vector<8x64xf32>
    %c32_127 = arith.constant 32 : index
    %c0_128 = arith.constant 0 : index
    %310 = vector.load %arg11[%c32_127, %c0_128] : memref<64x256xf32, #tpu.memory_space<vmem>>, vector<8x256xf32>
    %311 = arith.truncf %309 : vector<8x64xf32> to vector<8x64xbf16>
    %cst_129 = arith.constant dense<0.000000e+00> : vector<8x256xf32>
    %312 = tpu.matmul %311, %225, %cst_129 {dimension_numbers = #tpu.dot_dimension_numbers<[1], [0], [0], [1], [0, 0, 1, 1], [], []>} : vector<8x64xbf16>, vector<64x256xbf16>, vector<8x256xf32> -> vector<8x256xf32>
    %313 = arith.addf %310, %312 : vector<8x256xf32>
    %314 = vector.extract_strided_slice %313 {offsets = [0, 0], sizes = [8, 192], strides = [1, 1]} : vector<8x256xf32> to vector<8x192xf32>
    %315 = arith.negf %314 : vector<8x192xf32>
    %316 = math.exp %315 : vector<8x192xf32>
    %cst_130 = arith.constant 1.000000e+00 : f32
    %317 = vector.broadcast %cst_130 : f32 to vector<8x192xf32>
    %318 = arith.addf %317, %316 : vector<8x192xf32>
    %319 = arith.divf %317, %318 : vector<8x192xf32>
    %320 = vector.extract_strided_slice %313 {offsets = [0, 192], sizes = [8, 64], strides = [1, 1]} : vector<8x256xf32> to vector<8x64xf32>
    %321 = math.tanh %320 : vector<8x64xf32>
    %322 = vector.extract_strided_slice %319 {offsets = [0, 0], sizes = [8, 64], strides = [1, 1]} : vector<8x192xf32> to vector<8x64xf32>
    %323 = vector.extract_strided_slice %319 {offsets = [0, 64], sizes = [8, 64], strides = [1, 1]} : vector<8x192xf32> to vector<8x64xf32>
    %324 = vector.extract_strided_slice %319 {offsets = [0, 128], sizes = [8, 64], strides = [1, 1]} : vector<8x192xf32> to vector<8x64xf32>
    %325 = arith.mulf %323, %307 : vector<8x64xf32>
    %326 = arith.mulf %322, %321 : vector<8x64xf32>
    %327 = arith.addf %325, %326 : vector<8x64xf32>
    %328 = math.tanh %327 : vector<8x64xf32>
    %329 = arith.mulf %324, %328 : vector<8x64xf32>
    %c40_131 = arith.constant 40 : index
    %c0_132 = arith.constant 0 : index
    %330 = vector.load %arg11[%c40_131, %c0_132] : memref<64x256xf32, #tpu.memory_space<vmem>>, vector<8x256xf32>
    %331 = arith.truncf %329 : vector<8x64xf32> to vector<8x64xbf16>
    %cst_133 = arith.constant dense<0.000000e+00> : vector<8x256xf32>
    %332 = tpu.matmul %331, %225, %cst_133 {dimension_numbers = #tpu.dot_dimension_numbers<[1], [0], [0], [1], [0, 0, 1, 1], [], []>} : vector<8x64xbf16>, vector<64x256xbf16>, vector<8x256xf32> -> vector<8x256xf32>
    %333 = arith.addf %330, %332 : vector<8x256xf32>
    %334 = vector.extract_strided_slice %333 {offsets = [0, 0], sizes = [8, 192], strides = [1, 1]} : vector<8x256xf32> to vector<8x192xf32>
    %335 = arith.negf %334 : vector<8x192xf32>
    %336 = math.exp %335 : vector<8x192xf32>
    %cst_134 = arith.constant 1.000000e+00 : f32
    %337 = vector.broadcast %cst_134 : f32 to vector<8x192xf32>
    %338 = arith.addf %337, %336 : vector<8x192xf32>
    %339 = arith.divf %337, %338 : vector<8x192xf32>
    %340 = vector.extract_strided_slice %333 {offsets = [0, 192], sizes = [8, 64], strides = [1, 1]} : vector<8x256xf32> to vector<8x64xf32>
    %341 = math.tanh %340 : vector<8x64xf32>
    %342 = vector.extract_strided_slice %339 {offsets = [0, 0], sizes = [8, 64], strides = [1, 1]} : vector<8x192xf32> to vector<8x64xf32>
    %343 = vector.extract_strided_slice %339 {offsets = [0, 64], sizes = [8, 64], strides = [1, 1]} : vector<8x192xf32> to vector<8x64xf32>
    %344 = vector.extract_strided_slice %339 {offsets = [0, 128], sizes = [8, 64], strides = [1, 1]} : vector<8x192xf32> to vector<8x64xf32>
    %345 = arith.mulf %343, %327 : vector<8x64xf32>
    %346 = arith.mulf %342, %341 : vector<8x64xf32>
    %347 = arith.addf %345, %346 : vector<8x64xf32>
    %348 = math.tanh %347 : vector<8x64xf32>
    %349 = arith.mulf %344, %348 : vector<8x64xf32>
    %c48_135 = arith.constant 48 : index
    %c0_136 = arith.constant 0 : index
    %350 = vector.load %arg11[%c48_135, %c0_136] : memref<64x256xf32, #tpu.memory_space<vmem>>, vector<8x256xf32>
    %351 = arith.truncf %349 : vector<8x64xf32> to vector<8x64xbf16>
    %cst_137 = arith.constant dense<0.000000e+00> : vector<8x256xf32>
    %352 = tpu.matmul %351, %225, %cst_137 {dimension_numbers = #tpu.dot_dimension_numbers<[1], [0], [0], [1], [0, 0, 1, 1], [], []>} : vector<8x64xbf16>, vector<64x256xbf16>, vector<8x256xf32> -> vector<8x256xf32>
    %353 = arith.addf %350, %352 : vector<8x256xf32>
    %354 = vector.extract_strided_slice %353 {offsets = [0, 0], sizes = [8, 192], strides = [1, 1]} : vector<8x256xf32> to vector<8x192xf32>
    %355 = arith.negf %354 : vector<8x192xf32>
    %356 = math.exp %355 : vector<8x192xf32>
    %cst_138 = arith.constant 1.000000e+00 : f32
    %357 = vector.broadcast %cst_138 : f32 to vector<8x192xf32>
    %358 = arith.addf %357, %356 : vector<8x192xf32>
    %359 = arith.divf %357, %358 : vector<8x192xf32>
    %360 = vector.extract_strided_slice %353 {offsets = [0, 192], sizes = [8, 64], strides = [1, 1]} : vector<8x256xf32> to vector<8x64xf32>
    %361 = math.tanh %360 : vector<8x64xf32>
    %362 = vector.extract_strided_slice %359 {offsets = [0, 0], sizes = [8, 64], strides = [1, 1]} : vector<8x192xf32> to vector<8x64xf32>
    %363 = vector.extract_strided_slice %359 {offsets = [0, 64], sizes = [8, 64], strides = [1, 1]} : vector<8x192xf32> to vector<8x64xf32>
    %364 = vector.extract_strided_slice %359 {offsets = [0, 128], sizes = [8, 64], strides = [1, 1]} : vector<8x192xf32> to vector<8x64xf32>
    %365 = arith.mulf %363, %347 : vector<8x64xf32>
    %366 = arith.mulf %362, %361 : vector<8x64xf32>
    %367 = arith.addf %365, %366 : vector<8x64xf32>
    %368 = math.tanh %367 : vector<8x64xf32>
    %369 = arith.mulf %364, %368 : vector<8x64xf32>
    %c56_139 = arith.constant 56 : index
    %c0_140 = arith.constant 0 : index
    %370 = vector.load %arg11[%c56_139, %c0_140] : memref<64x256xf32, #tpu.memory_space<vmem>>, vector<8x256xf32>
    %371 = arith.truncf %369 : vector<8x64xf32> to vector<8x64xbf16>
    %cst_141 = arith.constant dense<0.000000e+00> : vector<8x256xf32>
    %372 = tpu.matmul %371, %225, %cst_141 {dimension_numbers = #tpu.dot_dimension_numbers<[1], [0], [0], [1], [0, 0, 1, 1], [], []>} : vector<8x64xbf16>, vector<64x256xbf16>, vector<8x256xf32> -> vector<8x256xf32>
    %373 = arith.addf %370, %372 : vector<8x256xf32>
    %374 = vector.extract_strided_slice %373 {offsets = [0, 0], sizes = [8, 192], strides = [1, 1]} : vector<8x256xf32> to vector<8x192xf32>
    %375 = arith.negf %374 : vector<8x192xf32>
    %376 = math.exp %375 : vector<8x192xf32>
    %cst_142 = arith.constant 1.000000e+00 : f32
    %377 = vector.broadcast %cst_142 : f32 to vector<8x192xf32>
    %378 = arith.addf %377, %376 : vector<8x192xf32>
    %379 = arith.divf %377, %378 : vector<8x192xf32>
    %380 = vector.extract_strided_slice %373 {offsets = [0, 192], sizes = [8, 64], strides = [1, 1]} : vector<8x256xf32> to vector<8x64xf32>
    %381 = math.tanh %380 : vector<8x64xf32>
    %382 = vector.extract_strided_slice %379 {offsets = [0, 0], sizes = [8, 64], strides = [1, 1]} : vector<8x192xf32> to vector<8x64xf32>
    %383 = vector.extract_strided_slice %379 {offsets = [0, 64], sizes = [8, 64], strides = [1, 1]} : vector<8x192xf32> to vector<8x64xf32>
    %384 = vector.extract_strided_slice %379 {offsets = [0, 128], sizes = [8, 64], strides = [1, 1]} : vector<8x192xf32> to vector<8x64xf32>
    %385 = arith.mulf %383, %367 : vector<8x64xf32>
    %386 = arith.mulf %382, %381 : vector<8x64xf32>
    %387 = arith.addf %385, %386 : vector<8x64xf32>
    %388 = math.tanh %387 : vector<8x64xf32>
    %389 = arith.mulf %384, %388 : vector<8x64xf32>
    %390 = vector.extract_strided_slice %389 {offsets = [0, 0], sizes = [8, 32], strides = [1, 1]} : vector<8x64xf32> to vector<8x32xf32>
    %391 = arith.truncf %390 : vector<8x32xf32> to vector<8x32xbf16>
    %c0_143 = arith.constant 0 : index
    %c0_144 = arith.constant 0 : index
    %392 = vector.load %arg7[%c0_143, %c0_144] : memref<32x4xbf16, #tpu.memory_space<vmem>>, vector<32x4xbf16>
    %cst_145 = arith.constant dense<0.000000e+00> : vector<8x4xf32>
    %393 = tpu.matmul %391, %392, %cst_145 {dimension_numbers = #tpu.dot_dimension_numbers<[1], [0], [0], [1], [0, 0, 1, 1], [], []>} : vector<8x32xbf16>, vector<32x4xbf16>, vector<8x4xf32> -> vector<8x4xf32>
    %394 = arith.addf %393, %249 : vector<8x4xf32>
    %c0_146 = arith.constant 0 : index
    %c0_147 = arith.constant 0 : index
    %395 = vector.load %arg9[%c0_146, %c0_147] : memref<1x4xf32, #tpu.memory_space<vmem>>, vector<1x4xf32>
    %396 = vector.broadcast %395 : vector<1x4xf32> to vector<8x4xf32>
    %397 = arith.addf %394, %396 : vector<8x4xf32>
    %c0_148 = arith.constant 0 : index
    %c0_149 = arith.constant 0 : index
    %398 = vector.load %arg10[%c0_148, %c0_149] : memref<8x4xf32, #tpu.memory_space<vmem>>, vector<8x4xf32>
    tpu.vector_store %arg10[%c0_148, %c0_149], %397 {strides = array<i32>} : memref<8x4xf32, #tpu.memory_space<vmem>>, vector<8x4xf32>,
    return
  }
}

</mosaic_0001>

<llo_original>
// kernel: tpu_custom_call.1
$region0: #{tpu_custom_call.1}
  #allocation0 [shape = 'u32[]', space=smem, size = 0x4, offset = 0x4, fixed_abs, tag = 'smem constant byte address 0x4 - core index']
  #allocation1 [shape = 'u32[144,128]{1,0:T(1,128)}', space=vmem, size = 0x12000, scoped, tag = 'internal scratch']
  #allocation2 [shape = 'f32[64,256]{1,0:T(8,128)}', space=vmem, size = 0x10000, scoped, tag = 'scratch operand']
  #allocation3 [shape = 'f32[64,128]{1,0:T(8,128)}', space=vmem, size = 0x8000, scoped, tag = 'scratch operand']
  %s0 = inlined_call_operand.vmem [shape: bf16[64,32], index: 0, kind: input, shape index: {}]
  %s1 = inlined_call_operand.hbm [shape: bf16[32,256], index: 1, kind: input, shape index: {}]
  %s2 = inlined_call_operand.vmem [shape: bf16[64,256], index: 2, kind: input, shape index: {}]
  %s3 = inlined_call_operand.vmem [shape: f32[1,256], index: 3, kind: input, shape index: {}]
  %s4 = inlined_call_operand.hbm [shape: bf16[128,256], index: 4, kind: input, shape index: {}]
  %s5 = inlined_call_operand.hbm [shape: bf16[64,256], index: 5, kind: input, shape index: {}]
  %s6 = inlined_call_operand.vmem [shape: f32[1,256], index: 6, kind: input, shape index: {}]
  %s7 = inlined_call_operand.vmem [shape: bf16[32,4], index: 7, kind: input, shape index: {}]
  %s8 = inlined_call_operand.vmem [shape: bf16[32,4], index: 8, kind: input, shape index: {}]
  %s9 = inlined_call_operand.vmem [shape: f32[1,4], index: 9, kind: input, shape index: {}]
  %s10 = inlined_call_operand.vmem [shape: f32[8,4], index: 10, kind: output, shape index: {}]
  %s11 = sld [smem:[#allocation0]]
  $region62: #{tpu_custom_call.1} parent=0
    _
  %s13 = ssub.s32 1, %s11
  %s14 = scalar_select 0, %s13, %s11
  $region1: #{tpu_custom_call.1} parent=0
    #allocation4 [shape = 'u8[16384]{0}', space=vmem, size = 0x4000, scoped, tag = 'input window, operand 1, single buffered']
    #allocation5 [shape = 's32[1]{0}', space=sflag, size = 0x4, scoped, tag = 'scoped memory for tpu_custom_call.1']
    #allocation6 [shape = 'u8[65536]{0}', space=vmem, size = 0x10000, scoped, tag = 'input window, operand 4, single buffered']
    #allocation7 [shape = 's32[1]{0}', space=sflag, size = 0x4, scoped, tag = 'scoped memory for tpu_custom_call.1']
    #allocation8 [shape = 'u8[32768]{0}', space=vmem, size = 0x8000, scoped, tag = 'input window, operand 5, single buffered']
    %15 = vsyncpa [#allocation5], 0
    %16 = vsyncpa [#allocation7], 0
    // Predicated region
    $region2: #{tpu_custom_call.1} parent=1 // pred_check
      _
    $region3: #{tpu_custom_call.1} parent=1 // pred_check_branch
      %18 = sbr.rel (0) target = $region5
    $region4: #{tpu_custom_call.1} parent=1 // pred_region
      _
    $region5: #{tpu_custom_call.1} parent=1 // pred_fallthru
      _
    // Predicated region
    $region6: #{tpu_custom_call.1} parent=1 // pred_check
      _
    $region7: #{tpu_custom_call.1} parent=1 // pred_check_branch
      %20 = sbr.rel (0) target = $region9
    $region8: #{tpu_custom_call.1} parent=1 // pred_region
      %s22 = ssub.s32 512, 512
      %23 = vsyncadd [#allocation5], %s22
      %s24 = sshll.u32 [#allocation4], 4
      %s25 = int_to_ptr.vmem [resolvable:$true] %s24
      %30 = dma.hbm_to_vmem [thread:$0]  %s1, 512, %s25, [#allocation5], 128, 128, 8
    $region9: #{tpu_custom_call.1} parent=1 // pred_fallthru
      _
    // Predicated region
    $region10: #{tpu_custom_call.1} parent=1 // pred_check
      _
    $region11: #{tpu_custom_call.1} parent=1 // pred_check_branch
      %32 = sbr.rel (0) target = $region13
    $region12: #{tpu_custom_call.1} parent=1 // pred_region
      _
    $region13: #{tpu_custom_call.1} parent=1 // pred_fallthru
      _
    // Predicated region
    $region14: #{tpu_custom_call.1} parent=1 // pred_check
      _
    $region15: #{tpu_custom_call.1} parent=1 // pred_check_branch
      %34 = sbr.rel (0) target = $region17
    $region16: #{tpu_custom_call.1} parent=1 // pred_region
      _
    $region17: #{tpu_custom_call.1} parent=1 // pred_fallthru
      _
    // Predicated region
    $region18: #{tpu_custom_call.1} parent=1 // pred_check
      _
    $region19: #{tpu_custom_call.1} parent=1 // pred_check_branch
      %36 = sbr.rel (0) target = $region21
    $region20: #{tpu_custom_call.1} parent=1 // pred_region
      %s38 = ssub.s32 2048, 2048
      %39 = vsyncadd [#allocation7], %s38
      %s40 = sshll.u32 [#allocation6], 4
      %s41 = int_to_ptr.vmem [resolvable:$true] %s40
      %46 = dma.hbm_to_vmem [thread:$0]  %s4, 2048, %s41, [#allocation7], 128, 128, 8
    $region21: #{tpu_custom_call.1} parent=1 // pred_fallthru
      _
    // Predicated region
    $region22: #{tpu_custom_call.1} parent=1 // pred_check
      _
    $region23: #{tpu_custom_call.1} parent=1 // pred_check_branch
      %48 = sbr.rel (0) target = $region25
    $region24: #{tpu_custom_call.1} parent=1 // pred_region
      %s50 = ssub.s32 1024, 1024
      %51 = vsyncadd [#allocation7], %s50
      %s52 = sshll.u32 [#allocation8], 4
      %s53 = int_to_ptr.vmem [resolvable:$true] %s52
      %58 = dma.hbm_to_vmem [thread:$0]  %s5, 1024, %s53, [#allocation7], 128, 128, 8
    $region25: #{tpu_custom_call.1} parent=1 // pred_fallthru
      _
    // Predicated region
    $region26: #{tpu_custom_call.1} parent=1 // pred_check
      _
    $region27: #{tpu_custom_call.1} parent=1 // pred_check_branch
      %60 = sbr.rel (0) target = $region29
    $region28: #{tpu_custom_call.1} parent=1 // pred_region
      _
    $region29: #{tpu_custom_call.1} parent=1 // pred_fallthru
      _
    // Predicated region
    $region30: #{tpu_custom_call.1} parent=1 // pred_check
      _
    $region31: #{tpu_custom_call.1} parent=1 // pred_check_branch
      %62 = sbr.rel (0) target = $region33
    $region32: #{tpu_custom_call.1} parent=1 // pred_region
      _
    $region33: #{tpu_custom_call.1} parent=1 // pred_fallthru
      _
    // Predicated region
    $region34: #{tpu_custom_call.1} parent=1 // pred_check
      _
    $region35: #{tpu_custom_call.1} parent=1 // pred_check_branch
      %64 = sbr.rel (0) target = $region37
    $region36: #{tpu_custom_call.1} parent=1 // pred_region
      _
    $region37: #{tpu_custom_call.1} parent=1 // pred_fallthru
      _
    // Predicated region
    $region38: #{tpu_custom_call.1} parent=1 // pred_check
      _
    $region39: #{tpu_custom_call.1} parent=1 // pred_check_branch
      %66 = sbr.rel (0) target = $region41
    $region40: #{tpu_custom_call.1} parent=1 // pred_region
      _
    $region41: #{tpu_custom_call.1} parent=1 // pred_fallthru
      _
    // Predicated region
    $region42: #{tpu_custom_call.1} parent=1 // pred_check
      _
    $region43: #{tpu_custom_call.1} parent=1 // pred_check_branch
      %68 = sbr.rel (0) target = $region45
    $region44: #{tpu_custom_call.1} parent=1 // pred_region
      %69 = dma.done [#allocation5], 512
    $region45: #{tpu_custom_call.1} parent=1 // pred_fallthru
      _
    // Predicated region
    $region46: #{tpu_custom_call.1} parent=1 // pred_check
      _
    $region47: #{tpu_custom_call.1} parent=1 // pred_check_branch
      %71 = sbr.rel (0) target = $region49
    $region48: #{tpu_custom_call.1} parent=1 // pred_region
      %72 = dma.done [#allocation7], 2048
    $region49: #{tpu_custom_call.1} parent=1 // pred_fallthru
      _
    // Predicated region
    $region50: #{tpu_custom_call.1} parent=1 // pred_check
      _
    $region51: #{tpu_custom_call.1} parent=1 // pred_check_branch
      %74 = sbr.rel (0) target = $region53
    $region52: #{tpu_custom_call.1} parent=1 // pred_region
      %75 = dma.done [#allocation7], 1024
    $region53: #{tpu_custom_call.1} parent=1 // pred_fallthru
      _
    %v77 = vld [vmem:[%s0] sm:$0xf]
    %v78 = vld [vmem:[%s0 + $0x4] sm:$0xf]
    %v79 = vld [vmem:[%s0 + $0x8] sm:$0xf]
    %v80 = vld [vmem:[%s0 + $0xc] sm:$0xf]
    %v81 = vld [vmem:[%s0 + $0x10] sm:$0xf]
    %v82 = vld [vmem:[%s0 + $0x14] sm:$0xf]
    %v83 = vld [vmem:[%s0 + $0x18] sm:$0xf]
    %v84 = vld [vmem:[%s0 + $0x1c] sm:$0xf]
    %v85 = vld [vmem:[#allocation4] sm:$0xff]
    %v86 = vld [vmem:[#allocation4 + $0x8] sm:$0xff]
    %v87 = vld [vmem:[#allocation4 + $0x10] sm:$0xff]
    %v88 = vld [vmem:[#allocation4 + $0x18] sm:$0xff]
    %v89 = vld [vmem:[%s3] sm:$0x3]
    %v91 = vlaneseq
    %v92 = vshrl.u32 %v91, 7
    %v93 = vsub.s32 0, %v92
    %v94 = vrot.slane %v89, %v93
    %v95 = vlaneseq
    %v96 = vshrl.u32 %v95, 7
    %v97 = vsub.s32 1, %v96
    %v98 = vrot.slane %v89, %v97
    %v109 = vunpack.c.l.b16 %v77
    %v110 = vunpack.c.l.b16 %v78
    %v111 = vunpack.c.l.b16 %v79
    %v112 = vunpack.c.l.b16 %v80
    %v113 = vunpack.c.l.b16 %v81
    %v114 = vunpack.c.l.b16 %v82
    %v115 = vunpack.c.l.b16 %v83
    %v116 = vunpack.c.l.b16 %v84
    %v117 = vpack.c.b16 %v110, %v109
    %v118 = vpack.c.b16 %v112, %v111
    %v119 = vpack.c.b16 %v114, %v113
    %v120 = vpack.c.b16 %v116, %v115
    %v125 = vunpack.c.l.b16 %v85
    %v126 = vunpack.c.h.b16 %v85
    %v127 = vunpack.c.l.b16 %v86
    %v128 = vunpack.c.h.b16 %v86
    %v129 = vunpack.c.l.b16 %v87
    %v130 = vunpack.c.h.b16 %v87
    %v131 = vunpack.c.l.b16 %v88
    %v132 = vunpack.c.h.b16 %v88
    %v133 = vpack.c.b16 %v127, %v125
    %v134 = vpack.c.b16 %v128, %v126
    %v135 = vpack.c.b16 %v131, %v129
    %v136 = vpack.c.b16 %v132, %v130
    %vm141 = vcmask 261120
    %v143 = vsel %vm141, %v117, 0
    %v146 = vsel %vm141, %v118, 0
    %v149 = vsel %vm141, %v119, 0
    %v152 = vsel %vm141, %v120, 0
    %154 = vmatprep.subr.bf16.mxu0 0
    %155 = vmatpush1.bf16.msra.mxu0 0
    %156 = vmatprep.subr.bf16.mxu0 0
    %157 = vmatpush1.bf16.msra.mxu0 0
    %158 = vmatprep.subr.bf16.mxu0 0
    %159 = vmatpush1.bf16.msra.mxu0 0
    %160 = vmatprep.subr.bf16.mxu0 0
    %161 = vmatpush1.bf16.msra.mxu0 0
    %162 = vmatprep.subr.bf16.mxu0 0
    %163 = vmatpush1.bf16.msra.mxu0 0
    %164 = vmatprep.subr.bf16.mxu0 0
    %165 = vmatpush1.bf16.msra.mxu0 0
    %166 = vmatprep.subr.bf16.mxu0 %v136
    %167 = vmatpush1.bf16.msra.mxu0 %v135
    %168 = vmatprep.subr.bf16.mxu0 %v134
    %169 = vmatpush1.bf16.msra.mxu0 %v133
    %170 = vmatprep.subr.bf16.mxu0 0
    %171 = vmatpush2.bf16.msra.mxu0 0
    %172 = vmatprep.subr.bf16.mxu0 0
    %173 = vmatpush2.bf16.msra.mxu0 0
    %174 = vmatprep.subr.bf16.mxu0 0
    %175 = vmatpush2.bf16.msra.mxu0 0
    %176 = vmatprep.subr.bf16.mxu0 0
    %177 = vmatpush2.bf16.msra.mxu0 0
    %178 = vmatprep.subr.bf16.mxu0 0
    %179 = vmatpush2.bf16.msra.mxu0 0
    %180 = vmatprep.subr.bf16.mxu0 0
    %181 = vmatpush2.bf16.msra.mxu0 0
    %182 = vmatprep.subr.bf16.mxu0 0
    %183 = vmatpush2.bf16.msra.mxu0 0
    %184 = vmatprep.subr.bf16.mxu0 0
    %185 = vmatpush2.bf16.msra.mxu0 0
    %186 = vmatprep.mubr.bf16.mxu0 0
    %187 = vmatmul.mubr.bf16.gmra.mxu0 %v143
    %v188 = vpop.f32.mrf.mxu0
    %v189 = vadd.f32 %v94, %v188
    %v190 = vpop.f32.mrf.mxu0
    %v191 = vadd.f32 %v98, %v190
    %v192 = vpop.f32.mrf.mxu0
    %v193 = vadd.f32 %v94, %v192
    %v194 = vpop.f32.mrf.mxu0
    %v195 = vadd.f32 %v98, %v194
    %196 = vmatprep.mubr.bf16.mxu0 0
    %197 = vmatmul.mubr.bf16.gmra.mxu0 %v146
    %v198 = vpop.f32.mrf.mxu0
    %v199 = vadd.f32 %v94, %v198
    %v200 = vpop.f32.mrf.mxu0
    %v201 = vadd.f32 %v98, %v200
    %v202 = vpop.f32.mrf.mxu0
    %v203 = vadd.f32 %v94, %v202
    %v204 = vpop.f32.mrf.mxu0
    %v205 = vadd.f32 %v98, %v204
    %206 = vmatprep.mubr.bf16.mxu0 0
    %207 = vmatmul.mubr.bf16.gmra.mxu0 %v149
    %v208 = vpop.f32.mrf.mxu0
    %v209 = vadd.f32 %v94, %v208
    %v210 = vpop.f32.mrf.mxu0
    %v211 = vadd.f32 %v98, %v210
    %v212 = vpop.f32.mrf.mxu0
    %v213 = vadd.f32 %v94, %v212
    %v214 = vpop.f32.mrf.mxu0
    %v215 = vadd.f32 %v98, %v214
    %216 = vmatprep.mubr.bf16.mxu0 0
    %217 = vmatmul.mubr.bf16.gmra.mxu0 %v152
    %v218 = vpop.f32.mrf.mxu0
    %v219 = vadd.f32 %v94, %v218
    %v220 = vpop.f32.mrf.mxu0
    %v221 = vadd.f32 %v98, %v220
    %v222 = vpop.f32.mrf.mxu0
    %v223 = vadd.f32 %v94, %v222
    %v224 = vpop.f32.mrf.mxu0
    %v225 = vadd.f32 %v98, %v224
    %226 = vdwg.mxu0
    %227 = vst [vmem:[#allocation2] sm:$0xff] %v189
    %228 = vst [vmem:[#allocation2 + $0x8] sm:$0xff] %v191
    %229 = vst [vmem:[#allocation2 + $0x10] sm:$0xff] %v193
    %230 = vst [vmem:[#allocation2 + $0x18] sm:$0xff] %v195
    %231 = vst [vmem:[#allocation2 + $0x20] sm:$0xff] %v199
    %232 = vst [vmem:[#allocation2 + $0x28] sm:$0xff] %v201
    %233 = vst [vmem:[#allocation2 + $0x30] sm:$0xff] %v203
    %234 = vst [vmem:[#allocation2 + $0x38] sm:$0xff] %v205
    %235 = vst [vmem:[#allocation2 + $0x40] sm:$0xff] %v209
    %236 = vst [vmem:[#allocation2 + $0x48] sm:$0xff] %v211
    %237 = vst [vmem:[#allocation2 + $0x50] sm:$0xff] %v213
    %238 = vst [vmem:[#allocation2 + $0x58] sm:$0xff] %v215
    %239 = vst [vmem:[#allocation2 + $0x60] sm:$0xff] %v219
    %240 = vst [vmem:[#allocation2 + $0x68] sm:$0xff] %v221
    %241 = vst [vmem:[#allocation2 + $0x70] sm:$0xff] %v223
    %242 = vst [vmem:[#allocation2 + $0x78] sm:$0xff] %v225
    %v243 = vld [vmem:[%s2] sm:$0xff]
    %v244 = vld [vmem:[%s2 + $0x8] sm:$0xff]
    %v245 = vld [vmem:[%s2 + $0x10] sm:$0xff]
    %v246 = vld [vmem:[%s2 + $0x18] sm:$0xff]
    %v247 = vld [vmem:[%s2 + $0x20] sm:$0xff]
    %v248 = vld [vmem:[%s2 + $0x28] sm:$0xff]
    %v249 = vld [vmem:[%s2 + $0x30] sm:$0xff]
    %v250 = vld [vmem:[%s2 + $0x38] sm:$0xff]
    %v251 = vld [vmem:[#allocation2] sm:$0xff]
    %v252 = vld [vmem:[#allocation2 + $0x8] sm:$0xff]
    %v261 = vunpack.c.l.b16 %v243
    %v262 = vunpack.c.h.b16 %v243
    %v263 = vunpack.c.l.b16 %v244
    %v264 = vunpack.c.h.b16 %v244
    %v265 = vunpack.c.l.b16 %v245
    %v266 = vunpack.c.h.b16 %v245
    %v267 = vunpack.c.l.b16 %v246
    %v268 = vunpack.c.h.b16 %v246
    %v269 = vunpack.c.l.b16 %v247
    %v270 = vunpack.c.h.b16 %v247
    %v271 = vunpack.c.l.b16 %v248
    %v272 = vunpack.c.h.b16 %v248
    %v273 = vunpack.c.l.b16 %v249
    %v274 = vunpack.c.h.b16 %v249
    %v275 = vunpack.c.l.b16 %v250
    %v276 = vunpack.c.h.b16 %v250
    %v277 = vpack.c.b16 %v263, %v261
    %v278 = vpack.c.b16 %v264, %v262
    %v279 = vpack.c.b16 %v267, %v265
    %v280 = vpack.c.b16 %v268, %v266
    %v281 = vpack.c.b16 %v271, %v269
    %v282 = vpack.c.b16 %v272, %v270
    %v283 = vpack.c.b16 %v275, %v273
    %v284 = vpack.c.b16 %v276, %v274
    %vm293 = vcmask 523264
    %v295 = vsel %vm293, 0, 0
    %297 = vmatprep.subr.bf16.mxu0 0
    %298 = vmatpush1.bf16.msra.mxu0 0
    %299 = vmatprep.subr.bf16.mxu0 0
    %300 = vmatpush1.bf16.msra.mxu0 0
    %301 = vmatprep.subr.bf16.mxu0 0
    %302 = vmatpush1.bf16.msra.mxu0 0
    %303 = vmatprep.subr.bf16.mxu0 0
    %304 = vmatpush1.bf16.msra.mxu0 0
    %305 = vmatprep.subr.bf16.mxu0 %v284
    %306 = vmatpush1.bf16.msra.mxu0 %v283
    %307 = vmatprep.subr.bf16.mxu0 %v282
    %308 = vmatpush1.bf16.msra.mxu0 %v281
    %309 = vmatprep.subr.bf16.mxu0 %v280
    %310 = vmatpush1.bf16.msra.mxu0 %v279
    %311 = vmatprep.subr.bf16.mxu0 %v278
    %312 = vmatpush1.bf16.msra.mxu0 %v277
    %313 = vmatprep.subr.bf16.mxu0 0
    %314 = vmatpush2.bf16.msra.mxu0 0
    %315 = vmatprep.subr.bf16.mxu0 0
    %316 = vmatpush2.bf16.msra.mxu0 0
    %317 = vmatprep.subr.bf16.mxu0 0
    %318 = vmatpush2.bf16.msra.mxu0 0
    %319 = vmatprep.subr.bf16.mxu0 0
    %320 = vmatpush2.bf16.msra.mxu0 0
    %321 = vmatprep.subr.bf16.mxu0 0
    %322 = vmatpush2.bf16.msra.mxu0 0
    %323 = vmatprep.subr.bf16.mxu0 0
    %324 = vmatpush2.bf16.msra.mxu0 0
    %325 = vmatprep.subr.bf16.mxu0 0
    %326 = vmatpush2.bf16.msra.mxu0 0
    %327 = vmatprep.subr.bf16.mxu0 0
    %328 = vmatpush2.bf16.msra.mxu0 0
    %329 = vmatprep.mubr.bf16.mxu0 0
    %330 = vmatmul.mubr.bf16.gmra.mxu0 %v295
    %v331 = vpop.f32.mrf.mxu0
    %v332 = vadd.f32 0.0, %v331
    %v333 = vpop.f32.mrf.mxu0
    %v334 = vadd.f32 0.0, %v333
    %v335 = vpop.f32.mrf.mxu0
    %v336 = vpop.f32.mrf.mxu0
    %337 = vdwg.mxu0
    %v338 = vadd.f32 %v251, %v332
    %v339 = vadd.f32 %v252, %v334
    %v340 = vxor.u32 %v338, 2147483648
    %v341 = vxor.u32 %v339, 2147483648
    %v342 = vmul.f32 %v340, 1.442695
    %v343 = vpow.pop %v342
    %v344 = vmul.f32 %v341, 1.442695
    %v345 = vpow.pop %v344
    %v346 = vadd.f32 %v343, 1.0
    %v347 = vadd.f32 %v345, 1.0
    %v348 = vrcp.pop %v346
    %v349 = vmul.f32 1.0, %v348
    %v350 = vrcp.pop %v347
    %v351 = vmul.f32 1.0, %v350
    %v352 = vtanh.pop %v339
    %v353 = vmul.f32 %v349, 0.0
    %355 = vrot.lane.b32.xlu0 %v352, 64
    %v356 = vpop.permute.xlu0 %355
    %v358 = vmul.f32 %v349, %v356
    %360 = vrot.lane.b32.xlu0 %v358, 64
    %v361 = vpop.permute.xlu0 %360
    %v363 = vadd.f32 %v353, %v361
    %v364 = vtanh.pop %v363
    %366 = vrot.lane.b32.xlu0 %v364, 64
    %v367 = vpop.permute.xlu0 %366
    %v369 = vmul.f32 %v351, %v367
    %370 = vst.msk [vmem:[#allocation3] sm:$0xff] %vm141, %v369
    %372 = vrot.lane.b32.xlu0 %v369, 64
    %v373 = vpop.permute.xlu0 %372
    %vm375 = vcmask 785920
    %376 = vst.msk [vmem:[#allocation3 + $0x38] sm:$0xff] %vm375, %v373
    %vm377 = vcmask 523520
    %378 = vst.msk [vmem:[#allocation3 + $0x38] sm:$0xff] %vm377, %v369
    %vm379 = vcmask 1048320
    %380 = vst.msk [vmem:[#allocation3] sm:$0xff] %vm379, %v373
    %v381 = vld [vmem:[#allocation2 + $0x10] sm:$0xff]
    %v382 = vld [vmem:[#allocation2 + $0x18] sm:$0xff]
    %v383 = vpack.c.bf16 %v369, %v369
    %v385 = vsel %vm293, %v383, 0
    %387 = vmatprep.subr.bf16.mxu0 0
    %388 = vmatpush1.bf16.msra.mxu0 0
    %389 = vmatprep.subr.bf16.mxu0 0
    %390 = vmatpush1.bf16.msra.mxu0 0
    %391 = vmatprep.subr.bf16.mxu0 0
    %392 = vmatpush1.bf16.msra.mxu0 0
    %393 = vmatprep.subr.bf16.mxu0 0
    %394 = vmatpush1.bf16.msra.mxu0 0
    %395 = vmatprep.subr.bf16.mxu0 %v284
    %396 = vmatpush1.bf16.msra.mxu0 %v283
    %397 = vmatprep.subr.bf16.mxu0 %v282
    %398 = vmatpush1.bf16.msra.mxu0 %v281
    %399 = vmatprep.subr.bf16.mxu0 %v280
    %400 = vmatpush1.bf16.msra.mxu0 %v279
    %401 = vmatprep.subr.bf16.mxu0 %v278
    %402 = vmatpush1.bf16.msra.mxu0 %v277
    %403 = vmatprep.subr.bf16.mxu0 0
    %404 = vmatpush2.bf16.msra.mxu0 0
    %405 = vmatprep.subr.bf16.mxu0 0
    %406 = vmatpush2.bf16.msra.mxu0 0
    %407 = vmatprep.subr.bf16.mxu0 0
    %408 = vmatpush2.bf16.msra.mxu0 0
    %409 = vmatprep.subr.bf16.mxu0 0
    %410 = vmatpush2.bf16.msra.mxu0 0
    %411 = vmatprep.subr.bf16.mxu0 0
    %412 = vmatpush2.bf16.msra.mxu0 0
    %413 = vmatprep.subr.bf16.mxu0 0
    %414 = vmatpush2.bf16.msra.mxu0 0
    %415 = vmatprep.subr.bf16.mxu0 0
    %416 = vmatpush2.bf16.msra.mxu0 0
    %417 = vmatprep.subr.bf16.mxu0 0
    %418 = vmatpush2.bf16.msra.mxu0 0
    %419 = vmatprep.mubr.bf16.mxu0 0
    %420 = vmatmul.mubr.bf16.gmra.mxu0 %v385
    %v421 = vpop.f32.mrf.mxu0
    %v422 = vadd.f32 0.0, %v421
    %v423 = vpop.f32.mrf.mxu0
    %v424 = vadd.f32 0.0, %v423
    %v425 = vpop.f32.mrf.mxu0
    %v426 = vpop.f32.mrf.mxu0
    %427 = vdwg.mxu0
    %v428 = vadd.f32 %v381, %v422
    %v429 = vadd.f32 %v382, %v424
    %v430 = vxor.u32 %v428, 2147483648
    %v431 = vxor.u32 %v429, 2147483648
    %v432 = vmul.f32 %v430, 1.442695
    %v433 = vpow.pop %v432
    %v434 = vmul.f32 %v431, 1.442695
    %v435 = vpow.pop %v434
    %v436 = vadd.f32 %v433, 1.0
    %v437 = vadd.f32 %v435, 1.0
    %v438 = vrcp.pop %v436
    %v439 = vmul.f32 1.0, %v438
    %v440 = vrcp.pop %v437
    %v441 = vmul.f32 1.0, %v440
    %v442 = vtanh.pop %v429
    %v443 = vmul.f32 %v439, %v363
    %445 = vrot.lane.b32.xlu0 %v442, 64
    %v446 = vpop.permute.xlu0 %445
    %v448 = vmul.f32 %v439, %v446
    %450 = vrot.lane.b32.xlu0 %v448, 64
    %v451 = vpop.permute.xlu0 %450
    %v453 = vadd.f32 %v443, %v451
    %v454 = vtanh.pop %v453
    %456 = vrot.lane.b32.xlu0 %v454, 64
    %v457 = vpop.permute.xlu0 %456
    %v459 = vmul.f32 %v441, %v457
    %460 = vst.msk [vmem:[#allocation3 + $0x8] sm:$0xff] %vm141, %v459
    %462 = vrot.lane.b32.xlu0 %v459, 64
    %v463 = vpop.permute.xlu0 %462
    %465 = vst.msk [vmem:[#allocation3 + $0x30] sm:$0xff] %vm375, %v463
    %466 = vst.msk [vmem:[#allocation3 + $0x30] sm:$0xff] %vm377, %v459
    %467 = vst.msk [vmem:[#allocation3 + $0x8] sm:$0xff] %vm379, %v463
    %v468 = vld [vmem:[#allocation2 + $0x20] sm:$0xff]
    %v469 = vld [vmem:[#allocation2 + $0x28] sm:$0xff]
    %v470 = vpack.c.bf16 %v459, %v459
    %v472 = vsel %vm293, %v470, 0
    %474 = vmatprep.subr.bf16.mxu0 0
    %475 = vmatpush1.bf16.msra.mxu0 0
    %476 = vmatprep.subr.bf16.mxu0 0
    %477 = vmatpush1.bf16.msra.mxu0 0
    %478 = vmatprep.subr.bf16.mxu0 0
    %479 = vmatpush1.bf16.msra.mxu0 0
    %480 = vmatprep.subr.bf16.mxu0 0
    %481 = vmatpush1.bf16.msra.mxu0 0
    %482 = vmatprep.subr.bf16.mxu0 %v284
    %483 = vmatpush1.bf16.msra.mxu0 %v283
    %484 = vmatprep.subr.bf16.mxu0 %v282
    %485 = vmatpush1.bf16.msra.mxu0 %v281
    %486 = vmatprep.subr.bf16.mxu0 %v280
    %487 = vmatpush1.bf16.msra.mxu0 %v279
    %488 = vmatprep.subr.bf16.mxu0 %v278
    %489 = vmatpush1.bf16.msra.mxu0 %v277
    %490 = vmatprep.subr.bf16.mxu0 0
    %491 = vmatpush2.bf16.msra.mxu0 0
    %492 = vmatprep.subr.bf16.mxu0 0
    %493 = vmatpush2.bf16.msra.mxu0 0
    %494 = vmatprep.subr.bf16.mxu0 0
    %495 = vmatpush2.bf16.msra.mxu0 0
    %496 = vmatprep.subr.bf16.mxu0 0
    %497 = vmatpush2.bf16.msra.mxu0 0
    %498 = vmatprep.subr.bf16.mxu0 0
    %499 = vmatpush2.bf16.msra.mxu0 0
    %500 = vmatprep.subr.bf16.mxu0 0
    %501 = vmatpush2.bf16.msra.mxu0 0
    %502 = vmatprep.subr.bf16.mxu0 0
    %503 = vmatpush2.bf16.msra.mxu0 0
    %504 = vmatprep.subr.bf16.mxu0 0
    %505 = vmatpush2.bf16.msra.mxu0 0
    %506 = vmatprep.mubr.bf16.mxu0 0
    %507 = vmatmul.mubr.bf16.gmra.mxu0 %v472
    %v508 = vpop.f32.mrf.mxu0
    %v509 = vadd.f32 0.0, %v508
    %v510 = vpop.f32.mrf.mxu0
    %v511 = vadd.f32 0.0, %v510
    %v512 = vpop.f32.mrf.mxu0
    %v513 = vpop.f32.mrf.mxu0
    %514 = vdwg.mxu0
    %v515 = vadd.f32 %v468, %v509
    %v516 = vadd.f32 %v469, %v511
    %v517 = vxor.u32 %v515, 2147483648
    %v518 = vxor.u32 %v516, 2147483648
    %v519 = vmul.f32 %v517, 1.442695
    %v520 = vpow.pop %v519
    %v521 = vmul.f32 %v518, 1.442695
    %v522 = vpow.pop %v521
    %v523 = vadd.f32 %v520, 1.0
    %v524 = vadd.f32 %v522, 1.0
    %v525 = vrcp.pop %v523
    %v526 = vmul.f32 1.0, %v525
    %v527 = vrcp.pop %v524
    %v528 = vmul.f32 1.0, %v527
    %v529 = vtanh.pop %v516
    %v530 = vmul.f32 %v526, %v453
    %532 = vrot.lane.b32.xlu0 %v529, 64
    %v533 = vpop.permute.xlu0 %532
    %v535 = vmul.f32 %v526, %v533
    %537 = vrot.lane.b32.xlu0 %v535, 64
    %v538 = vpop.permute.xlu0 %537
    %v540 = vadd.f32 %v530, %v538
    %v541 = vtanh.pop %v540
    %543 = vrot.lane.b32.xlu0 %v541, 64
    %v544 = vpop.permute.xlu0 %543
    %v546 = vmul.f32 %v528, %v544
    %547 = vst.msk [vmem:[#allocation3 + $0x10] sm:$0xff] %vm141, %v546
    %549 = vrot.lane.b32.xlu0 %v546, 64
    %v550 = vpop.permute.xlu0 %549
    %552 = vst.msk [vmem:[#allocation3 + $0x28] sm:$0xff] %vm375, %v550
    %553 = vst.msk [vmem:[#allocation3 + $0x28] sm:$0xff] %vm377, %v546
    %554 = vst.msk [vmem:[#allocation3 + $0x10] sm:$0xff] %vm379, %v550
    %v555 = vld [vmem:[#allocation2 + $0x30] sm:$0xff]
    %v556 = vld [vmem:[#allocation2 + $0x38] sm:$0xff]
    %v557 = vpack.c.bf16 %v546, %v546
    %v559 = vsel %vm293, %v557, 0
    %561 = vmatprep.subr.bf16.mxu0 0
    %562 = vmatpush1.bf16.msra.mxu0 0
    %563 = vmatprep.subr.bf16.mxu0 0
    %564 = vmatpush1.bf16.msra.mxu0 0
    %565 = vmatprep.subr.bf16.mxu0 0
    %566 = vmatpush1.bf16.msra.mxu0 0
    %567 = vmatprep.subr.bf16.mxu0 0
    %568 = vmatpush1.bf16.msra.mxu0 0
    %569 = vmatprep.subr.bf16.mxu0 %v284
    %570 = vmatpush1.bf16.msra.mxu0 %v283
    %571 = vmatprep.subr.bf16.mxu0 %v282
    %572 = vmatpush1.bf16.msra.mxu0 %v281
    %573 = vmatprep.subr.bf16.mxu0 %v280
    %574 = vmatpush1.bf16.msra.mxu0 %v279
    %575 = vmatprep.subr.bf16.mxu0 %v278
    %576 = vmatpush1.bf16.msra.mxu0 %v277
    %577 = vmatprep.subr.bf16.mxu0 0
    %578 = vmatpush2.bf16.msra.mxu0 0
    %579 = vmatprep.subr.bf16.mxu0 0
    %580 = vmatpush2.bf16.msra.mxu0 0
    %581 = vmatprep.subr.bf16.mxu0 0
    %582 = vmatpush2.bf16.msra.mxu0 0
    %583 = vmatprep.subr.bf16.mxu0 0
    %584 = vmatpush2.bf16.msra.mxu0 0
    %585 = vmatprep.subr.bf16.mxu0 0
    %586 = vmatpush2.bf16.msra.mxu0 0
    %587 = vmatprep.subr.bf16.mxu0 0
    %588 = vmatpush2.bf16.msra.mxu0 0
    %589 = vmatprep.subr.bf16.mxu0 0
    %590 = vmatpush2.bf16.msra.mxu0 0
    %591 = vmatprep.subr.bf16.mxu0 0
    %592 = vmatpush2.bf16.msra.mxu0 0
    %593 = vmatprep.mubr.bf16.mxu0 0
    %594 = vmatmul.mubr.bf16.gmra.mxu0 %v559
    %v595 = vpop.f32.mrf.mxu0
    %v596 = vadd.f32 0.0, %v595
    %v597 = vpop.f32.mrf.mxu0
    %v598 = vadd.f32 0.0, %v597
    %v599 = vpop.f32.mrf.mxu0
    %v600 = vpop.f32.mrf.mxu0
    %601 = vdwg.mxu0
    %v602 = vadd.f32 %v555, %v596
    %v603 = vadd.f32 %v556, %v598
    %v604 = vxor.u32 %v602, 2147483648
    %v605 = vxor.u32 %v603, 2147483648
    %v606 = vmul.f32 %v604, 1.442695
    %v607 = vpow.pop %v606
    %v608 = vmul.f32 %v605, 1.442695
    %v609 = vpow.pop %v608
    %v610 = vadd.f32 %v607, 1.0
    %v611 = vadd.f32 %v609, 1.0
    %v612 = vrcp.pop %v610
    %v613 = vmul.f32 1.0, %v612
    %v614 = vrcp.pop %v611
    %v615 = vmul.f32 1.0, %v614
    %v616 = vtanh.pop %v603
    %v617 = vmul.f32 %v613, %v540
    %619 = vrot.lane.b32.xlu0 %v616, 64
    %v620 = vpop.permute.xlu0 %619
    %v622 = vmul.f32 %v613, %v620
    %624 = vrot.lane.b32.xlu0 %v622, 64
    %v625 = vpop.permute.xlu0 %624
    %v627 = vadd.f32 %v617, %v625
    %v628 = vtanh.pop %v627
    %630 = vrot.lane.b32.xlu0 %v628, 64
    %v631 = vpop.permute.xlu0 %630
    %v633 = vmul.f32 %v615, %v631
    %634 = vst.msk [vmem:[#allocation3 + $0x18] sm:$0xff] %vm141, %v633
    %636 = vrot.lane.b32.xlu0 %v633, 64
    %v637 = vpop.permute.xlu0 %636
    %639 = vst.msk [vmem:[#allocation3 + $0x20] sm:$0xff] %vm375, %v637
    %640 = vst.msk [vmem:[#allocation3 + $0x20] sm:$0xff] %vm377, %v633
    %641 = vst.msk [vmem:[#allocation3 + $0x18] sm:$0xff] %vm379, %v637
    %v642 = vld [vmem:[#allocation2 + $0x40] sm:$0xff]
    %v643 = vld [vmem:[#allocation2 + $0x48] sm:$0xff]
    %v644 = vpack.c.bf16 %v633, %v633
    %v646 = vsel %vm293, %v644, 0
    %648 = vmatprep.subr.bf16.mxu0 0
    %649 = vmatpush1.bf16.msra.mxu0 0
    %650 = vmatprep.subr.bf16.mxu0 0
    %651 = vmatpush1.bf16.msra.mxu0 0
    %652 = vmatprep.subr.bf16.mxu0 0
    %653 = vmatpush1.bf16.msra.mxu0 0
    %654 = vmatprep.subr.bf16.mxu0 0
    %655 = vmatpush1.bf16.msra.mxu0 0
    %656 = vmatprep.subr.bf16.mxu0 %v284
    %657 = vmatpush1.bf16.msra.mxu0 %v283
    %658 = vmatprep.subr.bf16.mxu0 %v282
    %659 = vmatpush1.bf16.msra.mxu0 %v281
    %660 = vmatprep.subr.bf16.mxu0 %v280
    %661 = vmatpush1.bf16.msra.mxu0 %v279
    %662 = vmatprep.subr.bf16.mxu0 %v278
    %663 = vmatpush1.bf16.msra.mxu0 %v277
    %664 = vmatprep.subr.bf16.mxu0 0
    %665 = vmatpush2.bf16.msra.mxu0 0
    %666 = vmatprep.subr.bf16.mxu0 0
    %667 = vmatpush2.bf16.msra.mxu0 0
    %668 = vmatprep.subr.bf16.mxu0 0
    %669 = vmatpush2.bf16.msra.mxu0 0
    %670 = vmatprep.subr.bf16.mxu0 0
    %671 = vmatpush2.bf16.msra.mxu0 0
    %672 = vmatprep.subr.bf16.mxu0 0
    %673 = vmatpush2.bf16.msra.mxu0 0
    %674 = vmatprep.subr.bf16.mxu0 0
    %675 = vmatpush2.bf16.msra.mxu0 0
    %676 = vmatprep.subr.bf16.mxu0 0
    %677 = vmatpush2.bf16.msra.mxu0 0
    %678 = vmatprep.subr.bf16.mxu0 0
    %679 = vmatpush2.bf16.msra.mxu0 0
    %680 = vmatprep.mubr.bf16.mxu0 0
    %681 = vmatmul.mubr.bf16.gmra.mxu0 %v646
    %v682 = vpop.f32.mrf.mxu0
    %v683 = vadd.f32 0.0, %v682
    %v684 = vpop.f32.mrf.mxu0
    %v685 = vadd.f32 0.0, %v684
    %v686 = vpop.f32.mrf.mxu0
    %v687 = vpop.f32.mrf.mxu0
    %688 = vdwg.mxu0
    %v689 = vadd.f32 %v642, %v683
    %v690 = vadd.f32 %v643, %v685
    %v691 = vxor.u32 %v689, 2147483648
    %v692 = vxor.u32 %v690, 2147483648
    %v693 = vmul.f32 %v691, 1.442695
    %v694 = vpow.pop %v693
    %v695 = vmul.f32 %v692, 1.442695
    %v696 = vpow.pop %v695
    %v697 = vadd.f32 %v694, 1.0
    %v698 = vadd.f32 %v696, 1.0
    %v699 = vrcp.pop %v697
    %v700 = vmul.f32 1.0, %v699
    %v701 = vrcp.pop %v698
    %v702 = vmul.f32 1.0, %v701
    %v703 = vtanh.pop %v690
    %v704 = vmul.f32 %v700, %v627
    %706 = vrot.lane.b32.xlu0 %v703, 64
    %v707 = vpop.permute.xlu0 %706
    %v709 = vmul.f32 %v700, %v707
    %711 = vrot.lane.b32.xlu0 %v709, 64
    %v712 = vpop.permute.xlu0 %711
    %v714 = vadd.f32 %v704, %v712
    %v715 = vtanh.pop %v714
    %717 = vrot.lane.b32.xlu0 %v715, 64
    %v718 = vpop.permute.xlu0 %717
    %v720 = vmul.f32 %v702, %v718
    %721 = vst.msk [vmem:[#allocation3 + $0x20] sm:$0xff] %vm141, %v720
    %723 = vrot.lane.b32.xlu0 %v720, 64
    %v724 = vpop.permute.xlu0 %723
    %726 = vst.msk [vmem:[#allocation3 + $0x18] sm:$0xff] %vm375, %v724
    %727 = vst.msk [vmem:[#allocation3 + $0x18] sm:$0xff] %vm377, %v720
    %728 = vst.msk [vmem:[#allocation3 + $0x20] sm:$0xff] %vm379, %v724
    %v729 = vld [vmem:[#allocation2 + $0x50] sm:$0xff]
    %v730 = vld [vmem:[#allocation2 + $0x58] sm:$0xff]
    %v731 = vpack.c.bf16 %v720, %v720
    %v733 = vsel %vm293, %v731, 0
    %735 = vmatprep.subr.bf16.mxu0 0
    %736 = vmatpush1.bf16.msra.mxu0 0
    %737 = vmatprep.subr.bf16.mxu0 0
    %738 = vmatpush1.bf16.msra.mxu0 0
    %739 = vmatprep.subr.bf16.mxu0 0
    %740 = vmatpush1.bf16.msra.mxu0 0
    %741 = vmatprep.subr.bf16.mxu0 0
    %742 = vmatpush1.bf16.msra.mxu0 0
    %743 = vmatprep.subr.bf16.mxu0 %v284
    %744 = vmatpush1.bf16.msra.mxu0 %v283
    %745 = vmatprep.subr.bf16.mxu0 %v282
    %746 = vmatpush1.bf16.msra.mxu0 %v281
    %747 = vmatprep.subr.bf16.mxu0 %v280
    %748 = vmatpush1.bf16.msra.mxu0 %v279
    %749 = vmatprep.subr.bf16.mxu0 %v278
    %750 = vmatpush1.bf16.msra.mxu0 %v277
    %751 = vmatprep.subr.bf16.mxu0 0
    %752 = vmatpush2.bf16.msra.mxu0 0
    %753 = vmatprep.subr.bf16.mxu0 0
    %754 = vmatpush2.bf16.msra.mxu0 0
    %755 = vmatprep.subr.bf16.mxu0 0
    %756 = vmatpush2.bf16.msra.mxu0 0
    %757 = vmatprep.subr.bf16.mxu0 0
    %758 = vmatpush2.bf16.msra.mxu0 0
    %759 = vmatprep.subr.bf16.mxu0 0
    %760 = vmatpush2.bf16.msra.mxu0 0
    %761 = vmatprep.subr.bf16.mxu0 0
    %762 = vmatpush2.bf16.msra.mxu0 0
    %763 = vmatprep.subr.bf16.mxu0 0
    %764 = vmatpush2.bf16.msra.mxu0 0
    %765 = vmatprep.subr.bf16.mxu0 0
    %766 = vmatpush2.bf16.msra.mxu0 0
    %767 = vmatprep.mubr.bf16.mxu0 0
    %768 = vmatmul.mubr.bf16.gmra.mxu0 %v733
    %v769 = vpop.f32.mrf.mxu0
    %v770 = vadd.f32 0.0, %v769
    %v771 = vpop.f32.mrf.mxu0
    %v772 = vadd.f32 0.0, %v771
    %v773 = vpop.f32.mrf.mxu0
    %v774 = vpop.f32.mrf.mxu0
    %775 = vdwg.mxu0
    %v776 = vadd.f32 %v729, %v770
    %v777 = vadd.f32 %v730, %v772
    %v778 = vxor.u32 %v776, 2147483648
    %v779 = vxor.u32 %v777, 2147483648
    %v780 = vmul.f32 %v778, 1.442695
    %v781 = vpow.pop %v780
    %v782 = vmul.f32 %v779, 1.442695
    %v783 = vpow.pop %v782
    %v784 = vadd.f32 %v781, 1.0
    %v785 = vadd.f32 %v783, 1.0
    %v786 = vrcp.pop %v784
    %v787 = vmul.f32 1.0, %v786
    %v788 = vrcp.pop %v785
    %v789 = vmul.f32 1.0, %v788
    %v790 = vtanh.pop %v777
    %v791 = vmul.f32 %v787, %v714
    %793 = vrot.lane.b32.xlu0 %v790, 64
    %v794 = vpop.permute.xlu0 %793
    %v796 = vmul.f32 %v787, %v794
    %798 = vrot.lane.b32.xlu0 %v796, 64
    %v799 = vpop.permute.xlu0 %798
    %v801 = vadd.f32 %v791, %v799
    %v802 = vtanh.pop %v801
    %804 = vrot.lane.b32.xlu0 %v802, 64
    %v805 = vpop.permute.xlu0 %804
    %v807 = vmul.f32 %v789, %v805
    %808 = vst.msk [vmem:[#allocation3 + $0x28] sm:$0xff] %vm141, %v807
    %810 = vrot.lane.b32.xlu0 %v807, 64
    %v811 = vpop.permute.xlu0 %810
    %813 = vst.msk [vmem:[#allocation3 + $0x10] sm:$0xff] %vm375, %v811
    %814 = vst.msk [vmem:[#allocation3 + $0x10] sm:$0xff] %vm377, %v807
    %815 = vst.msk [vmem:[#allocation3 + $0x28] sm:$0xff] %vm379, %v811
    %v816 = vld [vmem:[#allocation2 + $0x60] sm:$0xff]
    %v817 = vld [vmem:[#allocation2 + $0x68] sm:$0xff]
    %v818 = vpack.c.bf16 %v807, %v807
    %v820 = vsel %vm293, %v818, 0
    %822 = vmatprep.subr.bf16.mxu0 0
    %823 = vmatpush1.bf16.msra.mxu0 0
    %824 = vmatprep.subr.bf16.mxu0 0
    %825 = vmatpush1.bf16.msra.mxu0 0
    %826 = vmatprep.subr.bf16.mxu0 0
    %827 = vmatpush1.bf16.msra.mxu0 0
    %828 = vmatprep.subr.bf16.mxu0 0
    %829 = vmatpush1.bf16.msra.mxu0 0
    %830 = vmatprep.subr.bf16.mxu0 %v284
    %831 = vmatpush1.bf16.msra.mxu0 %v283
    %832 = vmatprep.subr.bf16.mxu0 %v282
    %833 = vmatpush1.bf16.msra.mxu0 %v281
    %834 = vmatprep.subr.bf16.mxu0 %v280
    %835 = vmatpush1.bf16.msra.mxu0 %v279
    %836 = vmatprep.subr.bf16.mxu0 %v278
    %837 = vmatpush1.bf16.msra.mxu0 %v277
    %838 = vmatprep.subr.bf16.mxu0 0
    %839 = vmatpush2.bf16.msra.mxu0 0
    %840 = vmatprep.subr.bf16.mxu0 0
    %841 = vmatpush2.bf16.msra.mxu0 0
    %842 = vmatprep.subr.bf16.mxu0 0
    %843 = vmatpush2.bf16.msra.mxu0 0
    %844 = vmatprep.subr.bf16.mxu0 0
    %845 = vmatpush2.bf16.msra.mxu0 0
    %846 = vmatprep.subr.bf16.mxu0 0
    %847 = vmatpush2.bf16.msra.mxu0 0
    %848 = vmatprep.subr.bf16.mxu0 0
    %849 = vmatpush2.bf16.msra.mxu0 0
    %850 = vmatprep.subr.bf16.mxu0 0
    %851 = vmatpush2.bf16.msra.mxu0 0
    %852 = vmatprep.subr.bf16.mxu0 0
    %853 = vmatpush2.bf16.msra.mxu0 0
    %854 = vmatprep.mubr.bf16.mxu0 0
    %855 = vmatmul.mubr.bf16.gmra.mxu0 %v820
    %v856 = vpop.f32.mrf.mxu0
    %v857 = vadd.f32 0.0, %v856
    %v858 = vpop.f32.mrf.mxu0
    %v859 = vadd.f32 0.0, %v858
    %v860 = vpop.f32.mrf.mxu0
    %v861 = vpop.f32.mrf.mxu0
    %862 = vdwg.mxu0
    %v863 = vadd.f32 %v816, %v857
    %v864 = vadd.f32 %v817, %v859
    %v865 = vxor.u32 %v863, 2147483648
    %v866 = vxor.u32 %v864, 2147483648
    %v867 = vmul.f32 %v865, 1.442695
    %v868 = vpow.pop %v867
    %v869 = vmul.f32 %v866, 1.442695
    %v870 = vpow.pop %v869
    %v871 = vadd.f32 %v868, 1.0
    %v872 = vadd.f32 %v870, 1.0
    %v873 = vrcp.pop %v871
    %v874 = vmul.f32 1.0, %v873
    %v875 = vrcp.pop %v872
    %v876 = vmul.f32 1.0, %v875
    %v877 = vtanh.pop %v864
    %v878 = vmul.f32 %v874, %v801
    %880 = vrot.lane.b32.xlu0 %v877, 64
    %v881 = vpop.permute.xlu0 %880
    %v883 = vmul.f32 %v874, %v881
    %885 = vrot.lane.b32.xlu0 %v883, 64
    %v886 = vpop.permute.xlu0 %885
    %v888 = vadd.f32 %v878, %v886
    %v889 = vtanh.pop %v888
    %891 = vrot.lane.b32.xlu0 %v889, 64
    %v892 = vpop.permute.xlu0 %891
    %v894 = vmul.f32 %v876, %v892
    %895 = vst.msk [vmem:[#allocation3 + $0x30] sm:$0xff] %vm141, %v894
    %897 = vrot.lane.b32.xlu0 %v894, 64
    %v898 = vpop.permute.xlu0 %897
    %900 = vst.msk [vmem:[#allocation3 + $0x8] sm:$0xff] %vm375, %v898
    %901 = vst.msk [vmem:[#allocation3 + $0x8] sm:$0xff] %vm377, %v894
    %902 = vst.msk [vmem:[#allocation3 + $0x30] sm:$0xff] %vm379, %v898
    %v903 = vld [vmem:[#allocation2 + $0x70] sm:$0xff]
    %v904 = vld [vmem:[#allocation2 + $0x78] sm:$0xff]
    %v905 = vpack.c.bf16 %v894, %v894
    %v907 = vsel %vm293, %v905, 0
    %909 = vmatprep.subr.bf16.mxu0 0
    %910 = vmatpush1.bf16.msra.mxu0 0
    %911 = vmatprep.subr.bf16.mxu0 0
    %912 = vmatpush1.bf16.msra.mxu0 0
    %913 = vmatprep.subr.bf16.mxu0 0
    %914 = vmatpush1.bf16.msra.mxu0 0
    %915 = vmatprep.subr.bf16.mxu0 0
    %916 = vmatpush1.bf16.msra.mxu0 0
    %917 = vmatprep.subr.bf16.mxu0 %v284
    %918 = vmatpush1.bf16.msra.mxu0 %v283
    %919 = vmatprep.subr.bf16.mxu0 %v282
    %920 = vmatpush1.bf16.msra.mxu0 %v281
    %921 = vmatprep.subr.bf16.mxu0 %v280
    %922 = vmatpush1.bf16.msra.mxu0 %v279
    %923 = vmatprep.subr.bf16.mxu0 %v278
    %924 = vmatpush1.bf16.msra.mxu0 %v277
    %925 = vmatprep.subr.bf16.mxu0 0
    %926 = vmatpush2.bf16.msra.mxu0 0
    %927 = vmatprep.subr.bf16.mxu0 0
    %928 = vmatpush2.bf16.msra.mxu0 0
    %929 = vmatprep.subr.bf16.mxu0 0
    %930 = vmatpush2.bf16.msra.mxu0 0
    %931 = vmatprep.subr.bf16.mxu0 0
    %932 = vmatpush2.bf16.msra.mxu0 0
    %933 = vmatprep.subr.bf16.mxu0 0
    %934 = vmatpush2.bf16.msra.mxu0 0
    %935 = vmatprep.subr.bf16.mxu0 0
    %936 = vmatpush2.bf16.msra.mxu0 0
    %937 = vmatprep.subr.bf16.mxu0 0
    %938 = vmatpush2.bf16.msra.mxu0 0
    %939 = vmatprep.subr.bf16.mxu0 0
    %940 = vmatpush2.bf16.msra.mxu0 0
    %941 = vmatprep.mubr.bf16.mxu0 0
    %942 = vmatmul.mubr.bf16.gmra.mxu0 %v907
    %v943 = vpop.f32.mrf.mxu0
    %v944 = vadd.f32 0.0, %v943
    %v945 = vpop.f32.mrf.mxu0
    %v946 = vadd.f32 0.0, %v945
    %v947 = vpop.f32.mrf.mxu0
    %v948 = vpop.f32.mrf.mxu0
    %949 = vdwg.mxu0
    %v950 = vadd.f32 %v903, %v944
    %v951 = vadd.f32 %v904, %v946
    %v952 = vxor.u32 %v950, 2147483648
    %v953 = vxor.u32 %v951, 2147483648
    %v954 = vmul.f32 %v952, 1.442695
    %v955 = vpow.pop %v954
    %v956 = vmul.f32 %v953, 1.442695
    %v957 = vpow.pop %v956
    %v958 = vadd.f32 %v955, 1.0
    %v959 = vadd.f32 %v957, 1.0
    %v960 = vrcp.pop %v958
    %v961 = vmul.f32 1.0, %v960
    %v962 = vrcp.pop %v959
    %v963 = vmul.f32 1.0, %v962
    %v964 = vtanh.pop %v951
    %v965 = vmul.f32 %v961, %v888
    %967 = vrot.lane.b32.xlu0 %v964, 64
    %v968 = vpop.permute.xlu0 %967
    %v970 = vmul.f32 %v961, %v968
    %972 = vrot.lane.b32.xlu0 %v970, 64
    %v973 = vpop.permute.xlu0 %972
    %v975 = vadd.f32 %v965, %v973
    %v976 = vtanh.pop %v975
    %978 = vrot.lane.b32.xlu0 %v976, 64
    %v979 = vpop.permute.xlu0 %978
    %v981 = vmul.f32 %v963, %v979
    %982 = vst.msk [vmem:[#allocation3 + $0x38] sm:$0xff] %vm141, %v981
    %984 = vrot.lane.b32.xlu0 %v981, 64
    %v985 = vpop.permute.xlu0 %984
    %987 = vst.msk [vmem:[#allocation3] sm:$0xff] %vm375, %v985
    %988 = vst.msk [vmem:[#allocation3] sm:$0xff] %vm377, %v981
    %989 = vst.msk [vmem:[#allocation3 + $0x38] sm:$0xff] %vm379, %v985
    %v990 = vld [vmem:[#allocation3] sm:$0xff]
    %v991 = vld [vmem:[#allocation3 + $0x8] sm:$0xff]
    %v992 = vld [vmem:[#allocation3 + $0x10] sm:$0xff]
    %v993 = vld [vmem:[#allocation3 + $0x18] sm:$0xff]
    %v994 = vld [vmem:[#allocation3 + $0x20] sm:$0xff]
    %v995 = vld [vmem:[#allocation3 + $0x28] sm:$0xff]
    %v996 = vld [vmem:[#allocation3 + $0x30] sm:$0xff]
    %v997 = vld [vmem:[#allocation3 + $0x38] sm:$0xff]
    %v998 = vpack.c.bf16 %v991, %v990
    %v999 = vpack.c.bf16 %v993, %v992
    %v1000 = vpack.c.bf16 %v995, %v994
    %v1001 = vpack.c.bf16 %v997, %v996
    %v1002 = vld [vmem:[#allocation6] sm:$0xff]
    %v1003 = vld [vmem:[#allocation6 + $0x8] sm:$0xff]
    %v1004 = vld [vmem:[#allocation6 + $0x10] sm:$0xff]
    %v1005 = vld [vmem:[#allocation6 + $0x18] sm:$0xff]
    %v1006 = vld [vmem:[#allocation6 + $0x20] sm:$0xff]
    %v1007 = vld [vmem:[#allocation6 + $0x28] sm:$0xff]
    %v1008 = vld [vmem:[#allocation6 + $0x30] sm:$0xff]
    %v1009 = vld [vmem:[#allocation6 + $0x38] sm:$0xff]
    %v1010 = vld [vmem:[#allocation6 + $0x40] sm:$0xff]
    %v1011 = vld [vmem:[#allocation6 + $0x48] sm:$0xff]
    %v1012 = vld [vmem:[#allocation6 + $0x50] sm:$0xff]
    %v1013 = vld [vmem:[#allocation6 + $0x58] sm:$0xff]
    %v1014 = vld [vmem:[#allocation6 + $0x60] sm:$0xff]
    %v1015 = vld [vmem:[#allocation6 + $0x68] sm:$0xff]
    %v1016 = vld [vmem:[#allocation6 + $0x70] sm:$0xff]
    %v1017 = vld [vmem:[#allocation6 + $0x78] sm:$0xff]
    %v1018 = vld [vmem:[%s6] sm:$0x3]
    %v1020 = vlaneseq
    %v1021 = vshrl.u32 %v1020, 7
    %v1022 = vsub.s32 0, %v1021
    %v1023 = vrot.slane %v1018, %v1022
    %v1024 = vlaneseq
    %v1025 = vshrl.u32 %v1024, 7
    %v1026 = vsub.s32 1, %v1025
    %v1027 = vrot.slane %v1018, %v1026
    %v1046 = vunpack.c.l.b16 %v1002
    %v1047 = vunpack.c.h.b16 %v1002
    %v1048 = vunpack.c.l.b16 %v1003
    %v1049 = vunpack.c.h.b16 %v1003
    %v1050 = vunpack.c.l.b16 %v1004
    %v1051 = vunpack.c.h.b16 %v1004
    %v1052 = vunpack.c.l.b16 %v1005
    %v1053 = vunpack.c.h.b16 %v1005
    %v1054 = vunpack.c.l.b16 %v1006
    %v1055 = vunpack.c.h.b16 %v1006
    %v1056 = vunpack.c.l.b16 %v1007
    %v1057 = vunpack.c.h.b16 %v1007
    %v1058 = vunpack.c.l.b16 %v1008
    %v1059 = vunpack.c.h.b16 %v1008
    %v1060 = vunpack.c.l.b16 %v1009
    %v1061 = vunpack.c.h.b16 %v1009
    %v1062 = vunpack.c.l.b16 %v1010
    %v1063 = vunpack.c.h.b16 %v1010
    %v1064 = vunpack.c.l.b16 %v1011
    %v1065 = vunpack.c.h.b16 %v1011
    %v1066 = vunpack.c.l.b16 %v1012
    %v1067 = vunpack.c.h.b16 %v1012
    %v1068 = vunpack.c.l.b16 %v1013
    %v1069 = vunpack.c.h.b16 %v1013
    %v1070 = vunpack.c.l.b16 %v1014
    %v1071 = vunpack.c.h.b16 %v1014
    %v1072 = vunpack.c.l.b16 %v1015
    %v1073 = vunpack.c.h.b16 %v1015
    %v1074 = vunpack.c.l.b16 %v1016
    %v1075 = vunpack.c.h.b16 %v1016
    %v1076 = vunpack.c.l.b16 %v1017
    %v1077 = vunpack.c.h.b16 %v1017
    %v1078 = vpack.c.b16 %v1048, %v1046
    %v1079 = vpack.c.b16 %v1049, %v1047
    %v1080 = vpack.c.b16 %v1052, %v1050
    %v1081 = vpack.c.b16 %v1053, %v1051
    %v1082 = vpack.c.b16 %v1056, %v1054
    %v1083 = vpack.c.b16 %v1057, %v1055
    %v1084 = vpack.c.b16 %v1060, %v1058
    %v1085 = vpack.c.b16 %v1061, %v1059
    %v1086 = vpack.c.b16 %v1064, %v1062
    %v1087 = vpack.c.b16 %v1065, %v1063
    %v1088 = vpack.c.b16 %v1068, %v1066
    %v1089 = vpack.c.b16 %v1069, %v1067
    %v1090 = vpack.c.b16 %v1072, %v1070
    %v1091 = vpack.c.b16 %v1073, %v1071
    %v1092 = vpack.c.b16 %v1076, %v1074
    %v1093 = vpack.c.b16 %v1077, %v1075
    %1110 = vmatprep.subr.bf16.mxu0 %v1093
    %1111 = vmatpush1.bf16.msra.mxu0 %v1092
    %1112 = vmatprep.subr.bf16.mxu0 %v1091
    %1113 = vmatpush1.bf16.msra.mxu0 %v1090
    %1114 = vmatprep.subr.bf16.mxu0 %v1089
    %1115 = vmatpush1.bf16.msra.mxu0 %v1088
    %1116 = vmatprep.subr.bf16.mxu0 %v1087
    %1117 = vmatpush1.bf16.msra.mxu0 %v1086
    %1118 = vmatprep.subr.bf16.mxu0 %v1085
    %1119 = vmatpush1.bf16.msra.mxu0 %v1084
    %1120 = vmatprep.subr.bf16.mxu0 %v1083
    %1121 = vmatpush1.bf16.msra.mxu0 %v1082
    %1122 = vmatprep.subr.bf16.mxu0 %v1081
    %1123 = vmatpush1.bf16.msra.mxu0 %v1080
    %1124 = vmatprep.subr.bf16.mxu0 %v1079
    %1125 = vmatpush1.bf16.msra.mxu0 %v1078
    %1126 = vmatprep.subr.bf16.mxu0 0
    %1127 = vmatpush2.bf16.msra.mxu0 0
    %1128 = vmatprep.subr.bf16.mxu0 0
    %1129 = vmatpush2.bf16.msra.mxu0 0
    %1130 = vmatprep.subr.bf16.mxu0 0
    %1131 = vmatpush2.bf16.msra.mxu0 0
    %1132 = vmatprep.subr.bf16.mxu0 0
    %1133 = vmatpush2.bf16.msra.mxu0 0
    %1134 = vmatprep.subr.bf16.mxu0 0
    %1135 = vmatpush2.bf16.msra.mxu0 0
    %1136 = vmatprep.subr.bf16.mxu0 0
    %1137 = vmatpush2.bf16.msra.mxu0 0
    %1138 = vmatprep.subr.bf16.mxu0 0
    %1139 = vmatpush2.bf16.msra.mxu0 0
    %1140 = vmatprep.subr.bf16.mxu0 0
    %1141 = vmatpush2.bf16.msra.mxu0 0
    %1142 = vmatprep.mubr.bf16.mxu0 0
    %1143 = vmatmul.mubr.bf16.gmra.mxu0 %v998
    %v1144 = vpop.f32.mrf.mxu0
    %v1145 = vadd.f32 %v1023, %v1144
    %v1146 = vpop.f32.mrf.mxu0
    %v1147 = vadd.f32 %v1027, %v1146
    %v1148 = vpop.f32.mrf.mxu0
    %v1149 = vadd.f32 %v1023, %v1148
    %v1150 = vpop.f32.mrf.mxu0
    %v1151 = vadd.f32 %v1027, %v1150
    %1152 = vmatprep.mubr.bf16.mxu0 0
    %1153 = vmatmul.mubr.bf16.gmra.mxu0 %v999
    %v1154 = vpop.f32.mrf.mxu0
    %v1155 = vadd.f32 %v1023, %v1154
    %v1156 = vpop.f32.mrf.mxu0
    %v1157 = vadd.f32 %v1027, %v1156
    %v1158 = vpop.f32.mrf.mxu0
    %v1159 = vadd.f32 %v1023, %v1158
    %v1160 = vpop.f32.mrf.mxu0
    %v1161 = vadd.f32 %v1027, %v1160
    %1162 = vmatprep.mubr.bf16.mxu0 0
    %1163 = vmatmul.mubr.bf16.gmra.mxu0 %v1000
    %v1164 = vpop.f32.mrf.mxu0
    %v1165 = vadd.f32 %v1023, %v1164
    %v1166 = vpop.f32.mrf.mxu0
    %v1167 = vadd.f32 %v1027, %v1166
    %v1168 = vpop.f32.mrf.mxu0
    %v1169 = vadd.f32 %v1023, %v1168
    %v1170 = vpop.f32.mrf.mxu0
    %v1171 = vadd.f32 %v1027, %v1170
    %1172 = vmatprep.mubr.bf16.mxu0 0
    %1173 = vmatmul.mubr.bf16.gmra.mxu0 %v1001
    %v1174 = vpop.f32.mrf.mxu0
    %v1175 = vadd.f32 %v1023, %v1174
    %v1176 = vpop.f32.mrf.mxu0
    %v1177 = vadd.f32 %v1027, %v1176
    %v1178 = vpop.f32.mrf.mxu0
    %v1179 = vadd.f32 %v1023, %v1178
    %v1180 = vpop.f32.mrf.mxu0
    %v1181 = vadd.f32 %v1027, %v1180
    %1182 = vdwg.mxu0
    %1183 = vst [vmem:[#allocation2] sm:$0xff] %v1145
    %1184 = vst [vmem:[#allocation2 + $0x8] sm:$0xff] %v1147
    %1185 = vst [vmem:[#allocation2 + $0x10] sm:$0xff] %v1149
    %1186 = vst [vmem:[#allocation2 + $0x18] sm:$0xff] %v1151
    %1187 = vst [vmem:[#allocation2 + $0x20] sm:$0xff] %v1155
    %1188 = vst [vmem:[#allocation2 + $0x28] sm:$0xff] %v1157
    %1189 = vst [vmem:[#allocation2 + $0x30] sm:$0xff] %v1159
    %1190 = vst [vmem:[#allocation2 + $0x38] sm:$0xff] %v1161
    %1191 = vst [vmem:[#allocation2 + $0x40] sm:$0xff] %v1165
    %1192 = vst [vmem:[#allocation2 + $0x48] sm:$0xff] %v1167
    %1193 = vst [vmem:[#allocation2 + $0x50] sm:$0xff] %v1169
    %1194 = vst [vmem:[#allocation2 + $0x58] sm:$0xff] %v1171
    %1195 = vst [vmem:[#allocation2 + $0x60] sm:$0xff] %v1175
    %1196 = vst [vmem:[#allocation2 + $0x68] sm:$0xff] %v1177
    %1197 = vst [vmem:[#allocation2 + $0x70] sm:$0xff] %v1179
    %1198 = vst [vmem:[#allocation2 + $0x78] sm:$0xff] %v1181
    %v1199 = vld [vmem:[#allocation8] sm:$0xff]
    %v1200 = vld [vmem:[#allocation8 + $0x8] sm:$0xff]
    %v1201 = vld [vmem:[#allocation8 + $0x10] sm:$0xff]
    %v1202 = vld [vmem:[#allocation8 + $0x18] sm:$0xff]
    %v1203 = vld [vmem:[#allocation8 + $0x20] sm:$0xff]
    %v1204 = vld [vmem:[#allocation8 + $0x28] sm:$0xff]
    %v1205 = vld [vmem:[#allocation8 + $0x30] sm:$0xff]
    %v1206 = vld [vmem:[#allocation8 + $0x38] sm:$0xff]
    %v1207 = vld [vmem:[#allocation2] sm:$0xff]
    %v1208 = vld [vmem:[#allocation2 + $0x8] sm:$0xff]
    %v1217 = vunpack.c.l.b16 %v1199
    %v1218 = vunpack.c.h.b16 %v1199
    %v1219 = vunpack.c.l.b16 %v1200
    %v1220 = vunpack.c.h.b16 %v1200
    %v1221 = vunpack.c.l.b16 %v1201
    %v1222 = vunpack.c.h.b16 %v1201
    %v1223 = vunpack.c.l.b16 %v1202
    %v1224 = vunpack.c.h.b16 %v1202
    %v1225 = vunpack.c.l.b16 %v1203
    %v1226 = vunpack.c.h.b16 %v1203
    %v1227 = vunpack.c.l.b16 %v1204
    %v1228 = vunpack.c.h.b16 %v1204
    %v1229 = vunpack.c.l.b16 %v1205
    %v1230 = vunpack.c.h.b16 %v1205
    %v1231 = vunpack.c.l.b16 %v1206
    %v1232 = vunpack.c.h.b16 %v1206
    %v1233 = vpack.c.b16 %v1219, %v1217
    %v1234 = vpack.c.b16 %v1220, %v1218
    %v1235 = vpack.c.b16 %v1223, %v1221
    %v1236 = vpack.c.b16 %v1224, %v1222
    %v1237 = vpack.c.b16 %v1227, %v1225
    %v1238 = vpack.c.b16 %v1228, %v1226
    %v1239 = vpack.c.b16 %v1231, %v1229
    %v1240 = vpack.c.b16 %v1232, %v1230
    %1249 = vmatprep.subr.bf16.mxu0 0
    %1250 = vmatpush1.bf16.msra.mxu0 0
    %1251 = vmatprep.subr.bf16.mxu0 0
    %1252 = vmatpush1.bf16.msra.mxu0 0
    %1253 = vmatprep.subr.bf16.mxu0 0
    %1254 = vmatpush1.bf16.msra.mxu0 0
    %1255 = vmatprep.subr.bf16.mxu0 0
    %1256 = vmatpush1.bf16.msra.mxu0 0
    %1257 = vmatprep.subr.bf16.mxu0 %v1240
    %1258 = vmatpush1.bf16.msra.mxu0 %v1239
    %1259 = vmatprep.subr.bf16.mxu0 %v1238
    %1260 = vmatpush1.bf16.msra.mxu0 %v1237
    %1261 = vmatprep.subr.bf16.mxu0 %v1236
    %1262 = vmatpush1.bf16.msra.mxu0 %v1235
    %1263 = vmatprep.subr.bf16.mxu0 %v1234
    %1264 = vmatpush1.bf16.msra.mxu0 %v1233
    %1265 = vmatprep.subr.bf16.mxu0 0
    %1266 = vmatpush2.bf16.msra.mxu0 0
    %1267 = vmatprep.subr.bf16.mxu0 0
    %1268 = vmatpush2.bf16.msra.mxu0 0
    %1269 = vmatprep.subr.bf16.mxu0 0
    %1270 = vmatpush2.bf16.msra.mxu0 0
    %1271 = vmatprep.subr.bf16.mxu0 0
    %1272 = vmatpush2.bf16.msra.mxu0 0
    %1273 = vmatprep.subr.bf16.mxu0 0
    %1274 = vmatpush2.bf16.msra.mxu0 0
    %1275 = vmatprep.subr.bf16.mxu0 0
    %1276 = vmatpush2.bf16.msra.mxu0 0
    %1277 = vmatprep.subr.bf16.mxu0 0
    %1278 = vmatpush2.bf16.msra.mxu0 0
    %1279 = vmatprep.subr.bf16.mxu0 0
    %1280 = vmatpush2.bf16.msra.mxu0 0
    %1281 = vmatprep.mubr.bf16.mxu0 0
    %1282 = vmatmul.mubr.bf16.gmra.mxu0 %v295
    %v1283 = vpop.f32.mrf.mxu0
    %v1284 = vadd.f32 0.0, %v1283
    %v1285 = vpop.f32.mrf.mxu0
    %v1286 = vadd.f32 0.0, %v1285
    %v1287 = vpop.f32.mrf.mxu0
    %v1288 = vpop.f32.mrf.mxu0
    %1289 = vdwg.mxu0
    %v1290 = vadd.f32 %v1207, %v1284
    %v1291 = vadd.f32 %v1208, %v1286
    %v1292 = vxor.u32 %v1290, 2147483648
    %v1293 = vxor.u32 %v1291, 2147483648
    %v1294 = vmul.f32 %v1292, 1.442695
    %v1295 = vpow.pop %v1294
    %v1296 = vmul.f32 %v1293, 1.442695
    %v1297 = vpow.pop %v1296
    %v1298 = vadd.f32 %v1295, 1.0
    %v1299 = vadd.f32 %v1297, 1.0
    %v1300 = vrcp.pop %v1298
    %v1301 = vmul.f32 1.0, %v1300
    %v1302 = vrcp.pop %v1299
    %v1303 = vmul.f32 1.0, %v1302
    %v1304 = vtanh.pop %v1291
    %v1305 = vmul.f32 %v1301, 0.0
    %1307 = vrot.lane.b32.xlu0 %v1304, 64
    %v1308 = vpop.permute.xlu0 %1307
    %v1310 = vmul.f32 %v1301, %v1308
    %1312 = vrot.lane.b32.xlu0 %v1310, 64
    %v1313 = vpop.permute.xlu0 %1312
    %v1315 = vadd.f32 %v1305, %v1313
    %v1316 = vtanh.pop %v1315
    %1318 = vrot.lane.b32.xlu0 %v1316, 64
    %v1319 = vpop.permute.xlu0 %1318
    %v1321 = vmul.f32 %v1303, %v1319
    %v1322 = vpack.c.bf16 %v1321, %v1321
    %v1323 = vld [vmem:[%s8] sm:$0xf]
    %v1324 = vld [vmem:[%s8 + $0x4] sm:$0xf]
    %v1325 = vld [vmem:[%s8 + $0x8] sm:$0xf]
    %v1326 = vld [vmem:[%s8 + $0xc] sm:$0xf]
    %1328 = vrot.lane.b32.xlu0 %v1322, 96
    %v1329 = vpop.permute.xlu0 %1328
    %v1334 = vunpack.c.l.b16 %v1323
    %v1335 = vunpack.c.l.b16 %v1324
    %v1336 = vunpack.c.l.b16 %v1325
    %v1337 = vunpack.c.l.b16 %v1326
    %v1338 = vpack.c.b16 %v1335, %v1334
    %v1339 = vpack.c.b16 %v1337, %v1336
    %v1343 = vsel %vm141, %v1329, 0
    %1345 = vmatprep.subr.bf16.mxu0 0
    %1346 = vmatpush1.bf16.msra.mxu0 0
    %1347 = vmatprep.subr.bf16.mxu0 0
    %1348 = vmatpush1.bf16.msra.mxu0 0
    %1349 = vmatprep.subr.bf16.mxu0 0
    %1350 = vmatpush1.bf16.msra.mxu0 0
    %1351 = vmatprep.subr.bf16.mxu0 0
    %1352 = vmatpush1.bf16.msra.mxu0 0
    %1353 = vmatprep.subr.bf16.mxu0 0
    %1354 = vmatpush1.bf16.msra.mxu0 0
    %1355 = vmatprep.subr.bf16.mxu0 0
    %1356 = vmatpush1.bf16.msra.mxu0 0
    %1357 = vmatprep.subr.bf16.mxu0 0
    %1358 = vmatpush1.bf16.msra.mxu0 %v1339
    %1359 = vmatprep.subr.bf16.mxu0 0
    %1360 = vmatpush1.bf16.msra.mxu0 %v1338
    %1361 = vmatprep.subr.bf16.mxu0 0
    %1362 = vmatpush2.bf16.msra.mxu0 0
    %1363 = vmatprep.subr.bf16.mxu0 0
    %1364 = vmatpush2.bf16.msra.mxu0 0
    %1365 = vmatprep.subr.bf16.mxu0 0
    %1366 = vmatpush2.bf16.msra.mxu0 0
    %1367 = vmatprep.subr.bf16.mxu0 0
    %1368 = vmatpush2.bf16.msra.mxu0 0
    %1369 = vmatprep.subr.bf16.mxu0 0
    %1370 = vmatpush2.bf16.msra.mxu0 0
    %1371 = vmatprep.subr.bf16.mxu0 0
    %1372 = vmatpush2.bf16.msra.mxu0 0
    %1373 = vmatprep.subr.bf16.mxu0 0
    %1374 = vmatpush2.bf16.msra.mxu0 0
    %1375 = vmatprep.subr.bf16.mxu0 0
    %1376 = vmatpush2.bf16.msra.mxu0 0
    %1377 = vmatprep.mubr.bf16.mxu0 0
    %1378 = vmatmul.mubr.bf16.gmra.mxu0 %v1343
    %v1379 = vpop.f32.mrf.mxu0
    %v1380 = vadd.f32 0.0, %v1379
    %v1381 = vpop.f32.mrf.mxu0
    %v1382 = vpop.f32.mrf.mxu0
    %v1383 = vpop.f32.mrf.mxu0
    %1384 = vdwg.mxu0
    %v1385 = vld [vmem:[#allocation2 + $0x10] sm:$0xff]
    %v1386 = vld [vmem:[#allocation2 + $0x18] sm:$0xff]
    %v1388 = vsel %vm293, %v1322, 0
    %1390 = vmatprep.subr.bf16.mxu0 0
    %1391 = vmatpush1.bf16.msra.mxu0 0
    %1392 = vmatprep.subr.bf16.mxu0 0
    %1393 = vmatpush1.bf16.msra.mxu0 0
    %1394 = vmatprep.subr.bf16.mxu0 0
    %1395 = vmatpush1.bf16.msra.mxu0 0
    %1396 = vmatprep.subr.bf16.mxu0 0
    %1397 = vmatpush1.bf16.msra.mxu0 0
    %1398 = vmatprep.subr.bf16.mxu0 %v1240
    %1399 = vmatpush1.bf16.msra.mxu0 %v1239
    %1400 = vmatprep.subr.bf16.mxu0 %v1238
    %1401 = vmatpush1.bf16.msra.mxu0 %v1237
    %1402 = vmatprep.subr.bf16.mxu0 %v1236
    %1403 = vmatpush1.bf16.msra.mxu0 %v1235
    %1404 = vmatprep.subr.bf16.mxu0 %v1234
    %1405 = vmatpush1.bf16.msra.mxu0 %v1233
    %1406 = vmatprep.subr.bf16.mxu0 0
    %1407 = vmatpush2.bf16.msra.mxu0 0
    %1408 = vmatprep.subr.bf16.mxu0 0
    %1409 = vmatpush2.bf16.msra.mxu0 0
    %1410 = vmatprep.subr.bf16.mxu0 0
    %1411 = vmatpush2.bf16.msra.mxu0 0
    %1412 = vmatprep.subr.bf16.mxu0 0
    %1413 = vmatpush2.bf16.msra.mxu0 0
    %1414 = vmatprep.subr.bf16.mxu0 0
    %1415 = vmatpush2.bf16.msra.mxu0 0
    %1416 = vmatprep.subr.bf16.mxu0 0
    %1417 = vmatpush2.bf16.msra.mxu0 0
    %1418 = vmatprep.subr.bf16.mxu0 0
    %1419 = vmatpush2.bf16.msra.mxu0 0
    %1420 = vmatprep.subr.bf16.mxu0 0
    %1421 = vmatpush2.bf16.msra.mxu0 0
    %1422 = vmatprep.mubr.bf16.mxu0 0
    %1423 = vmatmul.mubr.bf16.gmra.mxu0 %v1388
    %v1424 = vpop.f32.mrf.mxu0
    %v1425 = vadd.f32 0.0, %v1424
    %v1426 = vpop.f32.mrf.mxu0
    %v1427 = vadd.f32 0.0, %v1426
    %v1428 = vpop.f32.mrf.mxu0
    %v1429 = vpop.f32.mrf.mxu0
    %1430 = vdwg.mxu0
    %v1431 = vadd.f32 %v1385, %v1425
    %v1432 = vadd.f32 %v1386, %v1427
    %v1433 = vxor.u32 %v1431, 2147483648
    %v1434 = vxor.u32 %v1432, 2147483648
    %v1435 = vmul.f32 %v1433, 1.442695
    %v1436 = vpow.pop %v1435
    %v1437 = vmul.f32 %v1434, 1.442695
    %v1438 = vpow.pop %v1437
    %v1439 = vadd.f32 %v1436, 1.0
    %v1440 = vadd.f32 %v1438, 1.0
    %v1441 = vrcp.pop %v1439
    %v1442 = vmul.f32 1.0, %v1441
    %v1443 = vrcp.pop %v1440
    %v1444 = vmul.f32 1.0, %v1443
    %v1445 = vtanh.pop %v1432
    %v1446 = vmul.f32 %v1442, %v1315
    %1448 = vrot.lane.b32.xlu0 %v1445, 64
    %v1449 = vpop.permute.xlu0 %1448
    %v1451 = vmul.f32 %v1442, %v1449
    %1453 = vrot.lane.b32.xlu0 %v1451, 64
    %v1454 = vpop.permute.xlu0 %1453
    %v1456 = vadd.f32 %v1446, %v1454
    %v1457 = vtanh.pop %v1456
    %1459 = vrot.lane.b32.xlu0 %v1457, 64
    %v1460 = vpop.permute.xlu0 %1459
    %v1462 = vmul.f32 %v1444, %v1460
    %v1463 = vld [vmem:[#allocation2 + $0x20] sm:$0xff]
    %v1464 = vld [vmem:[#allocation2 + $0x28] sm:$0xff]
    %v1465 = vpack.c.bf16 %v1462, %v1462
    %v1467 = vsel %vm293, %v1465, 0
    %1469 = vmatprep.subr.bf16.mxu0 0
    %1470 = vmatpush1.bf16.msra.mxu0 0
    %1471 = vmatprep.subr.bf16.mxu0 0
    %1472 = vmatpush1.bf16.msra.mxu0 0
    %1473 = vmatprep.subr.bf16.mxu0 0
    %1474 = vmatpush1.bf16.msra.mxu0 0
    %1475 = vmatprep.subr.bf16.mxu0 0
    %1476 = vmatpush1.bf16.msra.mxu0 0
    %1477 = vmatprep.subr.bf16.mxu0 %v1240
    %1478 = vmatpush1.bf16.msra.mxu0 %v1239
    %1479 = vmatprep.subr.bf16.mxu0 %v1238
    %1480 = vmatpush1.bf16.msra.mxu0 %v1237
    %1481 = vmatprep.subr.bf16.mxu0 %v1236
    %1482 = vmatpush1.bf16.msra.mxu0 %v1235
    %1483 = vmatprep.subr.bf16.mxu0 %v1234
    %1484 = vmatpush1.bf16.msra.mxu0 %v1233
    %1485 = vmatprep.subr.bf16.mxu0 0
    %1486 = vmatpush2.bf16.msra.mxu0 0
    %1487 = vmatprep.subr.bf16.mxu0 0
    %1488 = vmatpush2.bf16.msra.mxu0 0
    %1489 = vmatprep.subr.bf16.mxu0 0
    %1490 = vmatpush2.bf16.msra.mxu0 0
    %1491 = vmatprep.subr.bf16.mxu0 0
    %1492 = vmatpush2.bf16.msra.mxu0 0
    %1493 = vmatprep.subr.bf16.mxu0 0
    %1494 = vmatpush2.bf16.msra.mxu0 0
    %1495 = vmatprep.subr.bf16.mxu0 0
    %1496 = vmatpush2.bf16.msra.mxu0 0
    %1497 = vmatprep.subr.bf16.mxu0 0
    %1498 = vmatpush2.bf16.msra.mxu0 0
    %1499 = vmatprep.subr.bf16.mxu0 0
    %1500 = vmatpush2.bf16.msra.mxu0 0
    %1501 = vmatprep.mubr.bf16.mxu0 0
    %1502 = vmatmul.mubr.bf16.gmra.mxu0 %v1467
    %v1503 = vpop.f32.mrf.mxu0
    %v1504 = vadd.f32 0.0, %v1503
    %v1505 = vpop.f32.mrf.mxu0
    %v1506 = vadd.f32 0.0, %v1505
    %v1507 = vpop.f32.mrf.mxu0
    %v1508 = vpop.f32.mrf.mxu0
    %1509 = vdwg.mxu0
    %v1510 = vadd.f32 %v1463, %v1504
    %v1511 = vadd.f32 %v1464, %v1506
    %v1512 = vxor.u32 %v1510, 2147483648
    %v1513 = vxor.u32 %v1511, 2147483648
    %v1514 = vmul.f32 %v1512, 1.442695
    %v1515 = vpow.pop %v1514
    %v1516 = vmul.f32 %v1513, 1.442695
    %v1517 = vpow.pop %v1516
    %v1518 = vadd.f32 %v1515, 1.0
    %v1519 = vadd.f32 %v1517, 1.0
    %v1520 = vrcp.pop %v1518
    %v1521 = vmul.f32 1.0, %v1520
    %v1522 = vrcp.pop %v1519
    %v1523 = vmul.f32 1.0, %v1522
    %v1524 = vtanh.pop %v1511
    %v1525 = vmul.f32 %v1521, %v1456
    %1527 = vrot.lane.b32.xlu0 %v1524, 64
    %v1528 = vpop.permute.xlu0 %1527
    %v1530 = vmul.f32 %v1521, %v1528
    %1532 = vrot.lane.b32.xlu0 %v1530, 64
    %v1533 = vpop.permute.xlu0 %1532
    %v1535 = vadd.f32 %v1525, %v1533
    %v1536 = vtanh.pop %v1535
    %1538 = vrot.lane.b32.xlu0 %v1536, 64
    %v1539 = vpop.permute.xlu0 %1538
    %v1541 = vmul.f32 %v1523, %v1539
    %v1542 = vld [vmem:[#allocation2 + $0x30] sm:$0xff]
    %v1543 = vld [vmem:[#allocation2 + $0x38] sm:$0xff]
    %v1544 = vpack.c.bf16 %v1541, %v1541
    %v1546 = vsel %vm293, %v1544, 0
    %1548 = vmatprep.subr.bf16.mxu0 0
    %1549 = vmatpush1.bf16.msra.mxu0 0
    %1550 = vmatprep.subr.bf16.mxu0 0
    %1551 = vmatpush1.bf16.msra.mxu0 0
    %1552 = vmatprep.subr.bf16.mxu0 0
    %1553 = vmatpush1.bf16.msra.mxu0 0
    %1554 = vmatprep.subr.bf16.mxu0 0
    %1555 = vmatpush1.bf16.msra.mxu0 0
    %1556 = vmatprep.subr.bf16.mxu0 %v1240
    %1557 = vmatpush1.bf16.msra.mxu0 %v1239
    %1558 = vmatprep.subr.bf16.mxu0 %v1238
    %1559 = vmatpush1.bf16.msra.mxu0 %v1237
    %1560 = vmatprep.subr.bf16.mxu0 %v1236
    %1561 = vmatpush1.bf16.msra.mxu0 %v1235
    %1562 = vmatprep.subr.bf16.mxu0 %v1234
    %1563 = vmatpush1.bf16.msra.mxu0 %v1233
    %1564 = vmatprep.subr.bf16.mxu0 0
    %1565 = vmatpush2.bf16.msra.mxu0 0
    %1566 = vmatprep.subr.bf16.mxu0 0
    %1567 = vmatpush2.bf16.msra.mxu0 0
    %1568 = vmatprep.subr.bf16.mxu0 0
    %1569 = vmatpush2.bf16.msra.mxu0 0
    %1570 = vmatprep.subr.bf16.mxu0 0
    %1571 = vmatpush2.bf16.msra.mxu0 0
    %1572 = vmatprep.subr.bf16.mxu0 0
    %1573 = vmatpush2.bf16.msra.mxu0 0
    %1574 = vmatprep.subr.bf16.mxu0 0
    %1575 = vmatpush2.bf16.msra.mxu0 0
    %1576 = vmatprep.subr.bf16.mxu0 0
    %1577 = vmatpush2.bf16.msra.mxu0 0
    %1578 = vmatprep.subr.bf16.mxu0 0
    %1579 = vmatpush2.bf16.msra.mxu0 0
    %1580 = vmatprep.mubr.bf16.mxu0 0
    %1581 = vmatmul.mubr.bf16.gmra.mxu0 %v1546
    %v1582 = vpop.f32.mrf.mxu0
    %v1583 = vadd.f32 0.0, %v1582
    %v1584 = vpop.f32.mrf.mxu0
    %v1585 = vadd.f32 0.0, %v1584
    %v1586 = vpop.f32.mrf.mxu0
    %v1587 = vpop.f32.mrf.mxu0
    %1588 = vdwg.mxu0
    %v1589 = vadd.f32 %v1542, %v1583
    %v1590 = vadd.f32 %v1543, %v1585
    %v1591 = vxor.u32 %v1589, 2147483648
    %v1592 = vxor.u32 %v1590, 2147483648
    %v1593 = vmul.f32 %v1591, 1.442695
    %v1594 = vpow.pop %v1593
    %v1595 = vmul.f32 %v1592, 1.442695
    %v1596 = vpow.pop %v1595
    %v1597 = vadd.f32 %v1594, 1.0
    %v1598 = vadd.f32 %v1596, 1.0
    %v1599 = vrcp.pop %v1597
    %v1600 = vmul.f32 1.0, %v1599
    %v1601 = vrcp.pop %v1598
    %v1602 = vmul.f32 1.0, %v1601
    %v1603 = vtanh.pop %v1590
    %v1604 = vmul.f32 %v1600, %v1535
    %1606 = vrot.lane.b32.xlu0 %v1603, 64
    %v1607 = vpop.permute.xlu0 %1606
    %v1609 = vmul.f32 %v1600, %v1607
    %1611 = vrot.lane.b32.xlu0 %v1609, 64
    %v1612 = vpop.permute.xlu0 %1611
    %v1614 = vadd.f32 %v1604, %v1612
    %v1615 = vtanh.pop %v1614
    %1617 = vrot.lane.b32.xlu0 %v1615, 64
    %v1618 = vpop.permute.xlu0 %1617
    %v1620 = vmul.f32 %v1602, %v1618
    %v1621 = vld [vmem:[#allocation2 + $0x40] sm:$0xff]
    %v1622 = vld [vmem:[#allocation2 + $0x48] sm:$0xff]
    %v1623 = vpack.c.bf16 %v1620, %v1620
    %v1625 = vsel %vm293, %v1623, 0
    %1627 = vmatprep.subr.bf16.mxu0 0
    %1628 = vmatpush1.bf16.msra.mxu0 0
    %1629 = vmatprep.subr.bf16.mxu0 0
    %1630 = vmatpush1.bf16.msra.mxu0 0
    %1631 = vmatprep.subr.bf16.mxu0 0
    %1632 = vmatpush1.bf16.msra.mxu0 0
    %1633 = vmatprep.subr.bf16.mxu0 0
    %1634 = vmatpush1.bf16.msra.mxu0 0
    %1635 = vmatprep.subr.bf16.mxu0 %v1240
    %1636 = vmatpush1.bf16.msra.mxu0 %v1239
    %1637 = vmatprep.subr.bf16.mxu0 %v1238
    %1638 = vmatpush1.bf16.msra.mxu0 %v1237
    %1639 = vmatprep.subr.bf16.mxu0 %v1236
    %1640 = vmatpush1.bf16.msra.mxu0 %v1235
    %1641 = vmatprep.subr.bf16.mxu0 %v1234
    %1642 = vmatpush1.bf16.msra.mxu0 %v1233
    %1643 = vmatprep.subr.bf16.mxu0 0
    %1644 = vmatpush2.bf16.msra.mxu0 0
    %1645 = vmatprep.subr.bf16.mxu0 0
    %1646 = vmatpush2.bf16.msra.mxu0 0
    %1647 = vmatprep.subr.bf16.mxu0 0
    %1648 = vmatpush2.bf16.msra.mxu0 0
    %1649 = vmatprep.subr.bf16.mxu0 0
    %1650 = vmatpush2.bf16.msra.mxu0 0
    %1651 = vmatprep.subr.bf16.mxu0 0
    %1652 = vmatpush2.bf16.msra.mxu0 0
    %1653 = vmatprep.subr.bf16.mxu0 0
    %1654 = vmatpush2.bf16.msra.mxu0 0
    %1655 = vmatprep.subr.bf16.mxu0 0
    %1656 = vmatpush2.bf16.msra.mxu0 0
    %1657 = vmatprep.subr.bf16.mxu0 0
    %1658 = vmatpush2.bf16.msra.mxu0 0
    %1659 = vmatprep.mubr.bf16.mxu0 0
    %1660 = vmatmul.mubr.bf16.gmra.mxu0 %v1625
    %v1661 = vpop.f32.mrf.mxu0
    %v1662 = vadd.f32 0.0, %v1661
    %v1663 = vpop.f32.mrf.mxu0
    %v1664 = vadd.f32 0.0, %v1663
    %v1665 = vpop.f32.mrf.mxu0
    %v1666 = vpop.f32.mrf.mxu0
    %1667 = vdwg.mxu0
    %v1668 = vadd.f32 %v1621, %v1662
    %v1669 = vadd.f32 %v1622, %v1664
    %v1670 = vxor.u32 %v1668, 2147483648
    %v1671 = vxor.u32 %v1669, 2147483648
    %v1672 = vmul.f32 %v1670, 1.442695
    %v1673 = vpow.pop %v1672
    %v1674 = vmul.f32 %v1671, 1.442695
    %v1675 = vpow.pop %v1674
    %v1676 = vadd.f32 %v1673, 1.0
    %v1677 = vadd.f32 %v1675, 1.0
    %v1678 = vrcp.pop %v1676
    %v1679 = vmul.f32 1.0, %v1678
    %v1680 = vrcp.pop %v1677
    %v1681 = vmul.f32 1.0, %v1680
    %v1682 = vtanh.pop %v1669
    %v1683 = vmul.f32 %v1679, %v1614
    %1685 = vrot.lane.b32.xlu0 %v1682, 64
    %v1686 = vpop.permute.xlu0 %1685
    %v1688 = vmul.f32 %v1679, %v1686
    %1690 = vrot.lane.b32.xlu0 %v1688, 64
    %v1691 = vpop.permute.xlu0 %1690
    %v1693 = vadd.f32 %v1683, %v1691
    %v1694 = vtanh.pop %v1693
    %1696 = vrot.lane.b32.xlu0 %v1694, 64
    %v1697 = vpop.permute.xlu0 %1696
    %v1699 = vmul.f32 %v1681, %v1697
    %v1700 = vld [vmem:[#allocation2 + $0x50] sm:$0xff]
    %v1701 = vld [vmem:[#allocation2 + $0x58] sm:$0xff]
    %v1702 = vpack.c.bf16 %v1699, %v1699
    %v1704 = vsel %vm293, %v1702, 0
    %1706 = vmatprep.subr.bf16.mxu0 0
    %1707 = vmatpush1.bf16.msra.mxu0 0
    %1708 = vmatprep.subr.bf16.mxu0 0
    %1709 = vmatpush1.bf16.msra.mxu0 0
    %1710 = vmatprep.subr.bf16.mxu0 0
    %1711 = vmatpush1.bf16.msra.mxu0 0
    %1712 = vmatprep.subr.bf16.mxu0 0
    %1713 = vmatpush1.bf16.msra.mxu0 0
    %1714 = vmatprep.subr.bf16.mxu0 %v1240
    %1715 = vmatpush1.bf16.msra.mxu0 %v1239
    %1716 = vmatprep.subr.bf16.mxu0 %v1238
    %1717 = vmatpush1.bf16.msra.mxu0 %v1237
    %1718 = vmatprep.subr.bf16.mxu0 %v1236
    %1719 = vmatpush1.bf16.msra.mxu0 %v1235
    %1720 = vmatprep.subr.bf16.mxu0 %v1234
    %1721 = vmatpush1.bf16.msra.mxu0 %v1233
    %1722 = vmatprep.subr.bf16.mxu0 0
    %1723 = vmatpush2.bf16.msra.mxu0 0
    %1724 = vmatprep.subr.bf16.mxu0 0
    %1725 = vmatpush2.bf16.msra.mxu0 0
    %1726 = vmatprep.subr.bf16.mxu0 0
    %1727 = vmatpush2.bf16.msra.mxu0 0
    %1728 = vmatprep.subr.bf16.mxu0 0
    %1729 = vmatpush2.bf16.msra.mxu0 0
    %1730 = vmatprep.subr.bf16.mxu0 0
    %1731 = vmatpush2.bf16.msra.mxu0 0
    %1732 = vmatprep.subr.bf16.mxu0 0
    %1733 = vmatpush2.bf16.msra.mxu0 0
    %1734 = vmatprep.subr.bf16.mxu0 0
    %1735 = vmatpush2.bf16.msra.mxu0 0
    %1736 = vmatprep.subr.bf16.mxu0 0
    %1737 = vmatpush2.bf16.msra.mxu0 0
    %1738 = vmatprep.mubr.bf16.mxu0 0
    %1739 = vmatmul.mubr.bf16.gmra.mxu0 %v1704
    %v1740 = vpop.f32.mrf.mxu0
    %v1741 = vadd.f32 0.0, %v1740
    %v1742 = vpop.f32.mrf.mxu0
    %v1743 = vadd.f32 0.0, %v1742
    %v1744 = vpop.f32.mrf.mxu0
    %v1745 = vpop.f32.mrf.mxu0
    %1746 = vdwg.mxu0
    %v1747 = vadd.f32 %v1700, %v1741
    %v1748 = vadd.f32 %v1701, %v1743
    %v1749 = vxor.u32 %v1747, 2147483648
    %v1750 = vxor.u32 %v1748, 2147483648
    %v1751 = vmul.f32 %v1749, 1.442695
    %v1752 = vpow.pop %v1751
    %v1753 = vmul.f32 %v1750, 1.442695
    %v1754 = vpow.pop %v1753
    %v1755 = vadd.f32 %v1752, 1.0
    %v1756 = vadd.f32 %v1754, 1.0
    %v1757 = vrcp.pop %v1755
    %v1758 = vmul.f32 1.0, %v1757
    %v1759 = vrcp.pop %v1756
    %v1760 = vmul.f32 1.0, %v1759
    %v1761 = vtanh.pop %v1748
    %v1762 = vmul.f32 %v1758, %v1693
    %1764 = vrot.lane.b32.xlu0 %v1761, 64
    %v1765 = vpop.permute.xlu0 %1764
    %v1767 = vmul.f32 %v1758, %v1765
    %1769 = vrot.lane.b32.xlu0 %v1767, 64
    %v1770 = vpop.permute.xlu0 %1769
    %v1772 = vadd.f32 %v1762, %v1770
    %v1773 = vtanh.pop %v1772
    %1775 = vrot.lane.b32.xlu0 %v1773, 64
    %v1776 = vpop.permute.xlu0 %1775
    %v1778 = vmul.f32 %v1760, %v1776
    %v1779 = vld [vmem:[#allocation2 + $0x60] sm:$0xff]
    %v1780 = vld [vmem:[#allocation2 + $0x68] sm:$0xff]
    %v1781 = vpack.c.bf16 %v1778, %v1778
    %v1783 = vsel %vm293, %v1781, 0
    %1785 = vmatprep.subr.bf16.mxu0 0
    %1786 = vmatpush1.bf16.msra.mxu0 0
    %1787 = vmatprep.subr.bf16.mxu0 0
    %1788 = vmatpush1.bf16.msra.mxu0 0
    %1789 = vmatprep.subr.bf16.mxu0 0
    %1790 = vmatpush1.bf16.msra.mxu0 0
    %1791 = vmatprep.subr.bf16.mxu0 0
    %1792 = vmatpush1.bf16.msra.mxu0 0
    %1793 = vmatprep.subr.bf16.mxu0 %v1240
    %1794 = vmatpush1.bf16.msra.mxu0 %v1239
    %1795 = vmatprep.subr.bf16.mxu0 %v1238
    %1796 = vmatpush1.bf16.msra.mxu0 %v1237
    %1797 = vmatprep.subr.bf16.mxu0 %v1236
    %1798 = vmatpush1.bf16.msra.mxu0 %v1235
    %1799 = vmatprep.subr.bf16.mxu0 %v1234
    %1800 = vmatpush1.bf16.msra.mxu0 %v1233
    %1801 = vmatprep.subr.bf16.mxu0 0
    %1802 = vmatpush2.bf16.msra.mxu0 0
    %1803 = vmatprep.subr.bf16.mxu0 0
    %1804 = vmatpush2.bf16.msra.mxu0 0
    %1805 = vmatprep.subr.bf16.mxu0 0
    %1806 = vmatpush2.bf16.msra.mxu0 0
    %1807 = vmatprep.subr.bf16.mxu0 0
    %1808 = vmatpush2.bf16.msra.mxu0 0
    %1809 = vmatprep.subr.bf16.mxu0 0
    %1810 = vmatpush2.bf16.msra.mxu0 0
    %1811 = vmatprep.subr.bf16.mxu0 0
    %1812 = vmatpush2.bf16.msra.mxu0 0
    %1813 = vmatprep.subr.bf16.mxu0 0
    %1814 = vmatpush2.bf16.msra.mxu0 0
    %1815 = vmatprep.subr.bf16.mxu0 0
    %1816 = vmatpush2.bf16.msra.mxu0 0
    %1817 = vmatprep.mubr.bf16.mxu0 0
    %1818 = vmatmul.mubr.bf16.gmra.mxu0 %v1783
    %v1819 = vpop.f32.mrf.mxu0
    %v1820 = vadd.f32 0.0, %v1819
    %v1821 = vpop.f32.mrf.mxu0
    %v1822 = vadd.f32 0.0, %v1821
    %v1823 = vpop.f32.mrf.mxu0
    %v1824 = vpop.f32.mrf.mxu0
    %1825 = vdwg.mxu0
    %v1826 = vadd.f32 %v1779, %v1820
    %v1827 = vadd.f32 %v1780, %v1822
    %v1828 = vxor.u32 %v1826, 2147483648
    %v1829 = vxor.u32 %v1827, 2147483648
    %v1830 = vmul.f32 %v1828, 1.442695
    %v1831 = vpow.pop %v1830
    %v1832 = vmul.f32 %v1829, 1.442695
    %v1833 = vpow.pop %v1832
    %v1834 = vadd.f32 %v1831, 1.0
    %v1835 = vadd.f32 %v1833, 1.0
    %v1836 = vrcp.pop %v1834
    %v1837 = vmul.f32 1.0, %v1836
    %v1838 = vrcp.pop %v1835
    %v1839 = vmul.f32 1.0, %v1838
    %v1840 = vtanh.pop %v1827
    %v1841 = vmul.f32 %v1837, %v1772
    %1843 = vrot.lane.b32.xlu0 %v1840, 64
    %v1844 = vpop.permute.xlu0 %1843
    %v1846 = vmul.f32 %v1837, %v1844
    %1848 = vrot.lane.b32.xlu0 %v1846, 64
    %v1849 = vpop.permute.xlu0 %1848
    %v1851 = vadd.f32 %v1841, %v1849
    %v1852 = vtanh.pop %v1851
    %1854 = vrot.lane.b32.xlu0 %v1852, 64
    %v1855 = vpop.permute.xlu0 %1854
    %v1857 = vmul.f32 %v1839, %v1855
    %v1858 = vld [vmem:[#allocation2 + $0x70] sm:$0xff]
    %v1859 = vld [vmem:[#allocation2 + $0x78] sm:$0xff]
    %v1860 = vpack.c.bf16 %v1857, %v1857
    %v1862 = vsel %vm293, %v1860, 0
    %1864 = vmatprep.subr.bf16.mxu0 0
    %1865 = vmatpush1.bf16.msra.mxu0 0
    %1866 = vmatprep.subr.bf16.mxu0 0
    %1867 = vmatpush1.bf16.msra.mxu0 0
    %1868 = vmatprep.subr.bf16.mxu0 0
    %1869 = vmatpush1.bf16.msra.mxu0 0
    %1870 = vmatprep.subr.bf16.mxu0 0
    %1871 = vmatpush1.bf16.msra.mxu0 0
    %1872 = vmatprep.subr.bf16.mxu0 %v1240
    %1873 = vmatpush1.bf16.msra.mxu0 %v1239
    %1874 = vmatprep.subr.bf16.mxu0 %v1238
    %1875 = vmatpush1.bf16.msra.mxu0 %v1237
    %1876 = vmatprep.subr.bf16.mxu0 %v1236
    %1877 = vmatpush1.bf16.msra.mxu0 %v1235
    %1878 = vmatprep.subr.bf16.mxu0 %v1234
    %1879 = vmatpush1.bf16.msra.mxu0 %v1233
    %1880 = vmatprep.subr.bf16.mxu0 0
    %1881 = vmatpush2.bf16.msra.mxu0 0
    %1882 = vmatprep.subr.bf16.mxu0 0
    %1883 = vmatpush2.bf16.msra.mxu0 0
    %1884 = vmatprep.subr.bf16.mxu0 0
    %1885 = vmatpush2.bf16.msra.mxu0 0
    %1886 = vmatprep.subr.bf16.mxu0 0
    %1887 = vmatpush2.bf16.msra.mxu0 0
    %1888 = vmatprep.subr.bf16.mxu0 0
    %1889 = vmatpush2.bf16.msra.mxu0 0
    %1890 = vmatprep.subr.bf16.mxu0 0
    %1891 = vmatpush2.bf16.msra.mxu0 0
    %1892 = vmatprep.subr.bf16.mxu0 0
    %1893 = vmatpush2.bf16.msra.mxu0 0
    %1894 = vmatprep.subr.bf16.mxu0 0
    %1895 = vmatpush2.bf16.msra.mxu0 0
    %1896 = vmatprep.mubr.bf16.mxu0 0
    %1897 = vmatmul.mubr.bf16.gmra.mxu0 %v1862
    %v1898 = vpop.f32.mrf.mxu0
    %v1899 = vadd.f32 0.0, %v1898
    %v1900 = vpop.f32.mrf.mxu0
    %v1901 = vadd.f32 0.0, %v1900
    %v1902 = vpop.f32.mrf.mxu0
    %v1903 = vpop.f32.mrf.mxu0
    %1904 = vdwg.mxu0
    %v1905 = vadd.f32 %v1858, %v1899
    %v1906 = vadd.f32 %v1859, %v1901
    %v1907 = vxor.u32 %v1905, 2147483648
    %v1908 = vxor.u32 %v1906, 2147483648
    %v1909 = vmul.f32 %v1907, 1.442695
    %v1910 = vpow.pop %v1909
    %v1911 = vmul.f32 %v1908, 1.442695
    %v1912 = vpow.pop %v1911
    %v1913 = vadd.f32 %v1910, 1.0
    %v1914 = vadd.f32 %v1912, 1.0
    %v1915 = vrcp.pop %v1913
    %v1916 = vmul.f32 1.0, %v1915
    %v1917 = vrcp.pop %v1914
    %v1918 = vmul.f32 1.0, %v1917
    %v1919 = vtanh.pop %v1906
    %v1920 = vmul.f32 %v1916, %v1851
    %1922 = vrot.lane.b32.xlu0 %v1919, 64
    %v1923 = vpop.permute.xlu0 %1922
    %v1925 = vmul.f32 %v1916, %v1923
    %1927 = vrot.lane.b32.xlu0 %v1925, 64
    %v1928 = vpop.permute.xlu0 %1927
    %v1930 = vadd.f32 %v1920, %v1928
    %v1931 = vtanh.pop %v1930
    %1933 = vrot.lane.b32.xlu0 %v1931, 64
    %v1934 = vpop.permute.xlu0 %1933
    %v1936 = vmul.f32 %v1918, %v1934
    %v1937 = vpack.c.bf16 %v1936, %v1936
    %v1938 = vld [vmem:[%s7] sm:$0xf]
    %v1939 = vld [vmem:[%s7 + $0x4] sm:$0xf]
    %v1940 = vld [vmem:[%s7 + $0x8] sm:$0xf]
    %v1941 = vld [vmem:[%s7 + $0xc] sm:$0xf]
    %v1946 = vunpack.c.l.b16 %v1938
    %v1947 = vunpack.c.l.b16 %v1939
    %v1948 = vunpack.c.l.b16 %v1940
    %v1949 = vunpack.c.l.b16 %v1941
    %v1950 = vpack.c.b16 %v1947, %v1946
    %v1951 = vpack.c.b16 %v1949, %v1948
    %v1955 = vsel %vm141, %v1937, 0
    %1957 = vmatprep.subr.bf16.mxu0 0
    %1958 = vmatpush1.bf16.msra.mxu0 0
    %1959 = vmatprep.subr.bf16.mxu0 0
    %1960 = vmatpush1.bf16.msra.mxu0 0
    %1961 = vmatprep.subr.bf16.mxu0 0
    %1962 = vmatpush1.bf16.msra.mxu0 0
    %1963 = vmatprep.subr.bf16.mxu0 0
    %1964 = vmatpush1.bf16.msra.mxu0 0
    %1965 = vmatprep.subr.bf16.mxu0 0
    %1966 = vmatpush1.bf16.msra.mxu0 0
    %1967 = vmatprep.subr.bf16.mxu0 0
    %1968 = vmatpush1.bf16.msra.mxu0 0
    %1969 = vmatprep.subr.bf16.mxu0 0
    %1970 = vmatpush1.bf16.msra.mxu0 %v1951
    %1971 = vmatprep.subr.bf16.mxu0 0
    %1972 = vmatpush1.bf16.msra.mxu0 %v1950
    %1973 = vmatprep.subr.bf16.mxu0 0
    %1974 = vmatpush2.bf16.msra.mxu0 0
    %1975 = vmatprep.subr.bf16.mxu0 0
    %1976 = vmatpush2.bf16.msra.mxu0 0
    %1977 = vmatprep.subr.bf16.mxu0 0
    %1978 = vmatpush2.bf16.msra.mxu0 0
    %1979 = vmatprep.subr.bf16.mxu0 0
    %1980 = vmatpush2.bf16.msra.mxu0 0
    %1981 = vmatprep.subr.bf16.mxu0 0
    %1982 = vmatpush2.bf16.msra.mxu0 0
    %1983 = vmatprep.subr.bf16.mxu0 0
    %1984 = vmatpush2.bf16.msra.mxu0 0
    %1985 = vmatprep.subr.bf16.mxu0 0
    %1986 = vmatpush2.bf16.msra.mxu0 0
    %1987 = vmatprep.subr.bf16.mxu0 0
    %1988 = vmatpush2.bf16.msra.mxu0 0
    %1989 = vmatprep.mubr.bf16.mxu0 0
    %1990 = vmatmul.mubr.bf16.gmra.mxu0 %v1955
    %v1991 = vpop.f32.mrf.mxu0
    %v1992 = vadd.f32 %v1380, %v1991
    %v1993 = vpop.f32.mrf.mxu0
    %v1994 = vpop.f32.mrf.mxu0
    %v1995 = vpop.f32.mrf.mxu0
    %1996 = vdwg.mxu0
    %v1997 = vld [vmem:[%s9] sm:$0x1]
    %v1999 = vlaneseq
    %v2000 = vshrl.u32 %v1999, 7
    %v2001 = vsub.s32 0, %v2000
    %v2002 = vrot.slane %v1997, %v2001
    %v2004 = vadd.f32 %v1992, %v2002
    %vm2005 = vcmask 31744
    %2006 = vst.msk [vmem:[%s10] sm:$0xff] %vm2005, %v2004
    // Predicated region
    $region54: #{tpu_custom_call.1} parent=1 // pred_check
      _
    $region55: #{tpu_custom_call.1} parent=1 // pred_check_branch
      %2008 = sbr.rel (0) target = $region57
    $region56: #{tpu_custom_call.1} parent=1 // pred_region
      _
    $region57: #{tpu_custom_call.1} parent=1 // pred_fallthru
      _
    // Predicated region
    $region58: #{tpu_custom_call.1} parent=1 // pred_check
      _
    $region59: #{tpu_custom_call.1} parent=1 // pred_check_branch
      %2010 = sbr.rel (0) target = $region61
    $region60: #{tpu_custom_call.1} parent=1 // pred_region
      _
    $region61: #{tpu_custom_call.1} parent=1 // pred_fallthru
      _
    %2011 = vsyncpa [#allocation5], 1
    %2012 = vsyncpa [#allocation7], 1

</llo_original>
